<compile_context>
chip_gen: v7x
topology: tpu7x:2x2x1
jax: 0.10.0
libtpu: 0.0.40
codegen_flags: <defaults>
</compile_context>

<pallas_src>
import functools

import jax
import jax.numpy as jnp
import numpy as np
from jax.experimental import pallas as pl
from jax.experimental.pallas import tpu as pltpu


def _round_up(x, m):
    return (x + m - 1) // m * m


def _mobileone_kernel(x_ref, w_ref, b_ref, o_ref, *, TH, W, K):
    # x_ref: (1, Hp, Wp, Cp)   padded full image (resident across the row-tile axis)
    # w_ref: (K*K*Cp, Cop)     fully reparameterized 3x3 conv weights
    # b_ref: (1, Cop)          fully reparameterized bias
    # o_ref: (1, TH, W, Cop)   output row tile
    row0 = pl.multiple_of(pl.program_id(1) * TH, TH)

    # im2col over the K*K taps; each tap is exactly 128 lanes wide (Cp padded to 128),
    # so the concat is lane-aligned and the whole conv is ONE MXU contraction.
    taps = []
    for kh in range(K):
        for kw in range(K):
            taps.append(x_ref[0, pl.ds(row0 + kh, TH), kw:kw + W, :])
    patches = jnp.concatenate(taps, axis=-1)                  # (TH, W, K*K*Cp)

    acc = jax.lax.dot_general(
        patches, w_ref[...],
        dimension_numbers=(((2,), (0,)), ((), ())),
        preferred_element_type=jnp.float32)                    # (TH, W, Cop) f32

    # bias + ReLU epilogue in f32 (use_se=False -> SE is nn.Identity).
    o_ref[0] = jnp.maximum(acc + b_ref[0], 0.0).astype(o_ref.dtype)


def _fuse_conv_bn(w, gamma, beta, mean, var, eps=1e-5):
    """Fold eval-mode BN into a preceding (bias-free) conv. w is HWIO or IO."""
    std = jnp.sqrt(var + eps)
    t = gamma / std
    return w * t, beta - mean * t


def _fuse_identity_bn(gamma, beta, mean, var, eps=1e-5):
    std = jnp.sqrt(var + eps)
    s = gamma / std
    return s, beta - mean * s


def _reparameterize(params, K):
    """Fold 3x3+BN, 1x1+BN and identity-BN into one 3x3 conv (MobileOne reparam)."""
    w3, b3 = _fuse_conv_bn(params["w3"], *params["bn3"])        # (K,K,Cin,Cout)
    w1, b1 = _fuse_conv_bn(params["w1"], *params["bn1"])        # (Cin,Cout)
    s_id, b_id = _fuse_identity_bn(*params["bn_id"])            # (Cin,)
    Cin, Cout = w1.shape
    assert Cin == Cout, "identity (rbr_skip) branch requires in_channels == out_channels"
    pad = K // 2
    w = w3.at[pad, pad].add(w1 + jnp.diag(s_id))
    b = b3 + b1 + b_id
    return w, b


def mobileone_block(x_nchw, params, *, K=3, th=8, mxu_dtype=jnp.float32):
    """x_nchw: (N, C, H, W) float32. Returns (N, C, H, W) float32."""
    N, Cin, H, W = x_nchw.shape
    pad = K // 2

    # Branch fusion / reparameterization: pure parameter algebra in the wrapper.
    w, b = _reparameterize(params, K)
    Cout = w.shape[-1]

    # Lane-dense channel padding (128 lanes / vreg, full MXU column blocks).
    Cp = _round_up(Cin, 128)
    Cop = _round_up(Cout, 128)
    w = jnp.pad(w, ((0, 0), (0, 0), (0, Cp - Cin), (0, Cop - Cout)))
    w = w.reshape(K * K * Cp, Cop).astype(mxu_dtype)
    b2d = jnp.pad(b, (0, Cop - Cout)).reshape(1, Cop).astype(jnp.float32)

    # NCHW -> NHWC, then ONE pad pass covering both the spatial halo and channel pad.
    # TODO(synk): an NHWC end-to-end pipeline with in-kernel halo handling would avoid
    # this extra HBM round-trip of x and the output transpose.
    x = jnp.transpose(x_nchw, (0, 2, 3, 1))
    x_pad = jnp.pad(
        x, ((0, 0), (pad, pad), (pad, pad), (0, Cp - Cin))).astype(mxu_dtype)

    TH = th if H % th == 0 else H            # row-tile height (must divide H)
    Hp, Wp = H + 2 * pad, W + 2 * pad

    kernel = functools.partial(_mobileone_kernel, TH=TH, W=W, K=K)

    out_nhwc = pl.pallas_call(
        kernel,
        out_shape=jax.ShapeDtypeStruct((N, H, W, Cop), jnp.float32),
        grid_spec=pltpu.PrefetchScalarGridSpec(
            num_scalar_prefetch=0,
            grid=(N, H // TH),
            in_specs=[
                # Padded image: block index constant across the h axis -> stays
                # resident, only re-DMA'd when n changes.
                pl.BlockSpec((1, Hp, Wp, Cp), lambda n, h: (n, 0, 0, 0)),
                # NOTE: weights/bias are grid-invariant; at real channel counts
                # pipeline_mode=pl.Buffered(1) would halve their VMEM buffering.
                pl.BlockSpec((K * K * Cp, Cop), lambda n, h: (0, 0)),
                pl.BlockSpec((1, Cop), lambda n, h: (0, 0)),
            ],
            out_specs=pl.BlockSpec((1, TH, W, Cop), lambda n, h: (n, h, 0, 0)),
        ),
        compiler_params=pltpu.CompilerParams(
            dimension_semantics=("parallel", "parallel")),
    )(x_pad, w, b2d)

    out_nhwc = out_nhwc[..., :Cout]                     # drop channel padding
    return jnp.transpose(out_nhwc, (0, 3, 1, 2))        # back to NCHW


def _reference(x_nchw, params, K=3):
    """Pure-JAX multi-branch reference (un-reparameterized) for correctness."""
    w3, b3 = _fuse_conv_bn(params["w3"], *params["bn3"])
    w1, b1 = _fuse_conv_bn(params["w1"], *params["bn1"])
    s_id, b_id = _fuse_identity_bn(*params["bn_id"])
    pad = K // 2
    x = jnp.transpose(x_nchw, (0, 2, 3, 1))
    dn = ("NHWC", "HWIO", "NHWC")
    y3 = jax.lax.conv_general_dilated(x, w3, (1, 1), [(pad, pad), (pad, pad)],
                                      dimension_numbers=dn) + b3
    y1 = jax.lax.conv_general_dilated(x, w1[None, None], (1, 1), "VALID",
                                      dimension_numbers=dn) + b1
    yid = x * s_id + b_id
    out = jnp.maximum(y3 + y1 + yid, 0.0)
    return jnp.transpose(out, (0, 3, 1, 2))


def _make_params(key, Cin, Cout, K):
    ks = jax.random.split(key, 14)

    def bn(k0, k1, k2, k3, C):
        gamma = jax.random.uniform(k0, (C,), jnp.float32, 0.5, 1.5)
        beta = jax.random.normal(k1, (C,), jnp.float32) * 0.1
        mean = jax.random.normal(k2, (C,), jnp.float32) * 0.1
        var = jax.random.uniform(k3, (C,), jnp.float32, 0.5, 1.5)
        return gamma, beta, mean, var

    return {
        "w3": jax.random.normal(ks[0], (K, K, Cin, Cout), jnp.float32) * 0.1,
        "bn3": bn(ks[1], ks[2], ks[3], ks[4], Cout),
        "w1": jax.random.normal(ks[5], (Cin, Cout), jnp.float32) * 0.1,
        "bn1": bn(ks[6], ks[7], ks[8], ks[9], Cout),
        "bn_id": bn(ks[10], ks[11], ks[12], ks[13], Cin),
    }


if __name__ == "__main__":
    N, C, H, W, K = 2, 32, 16, 16, 3
    key = jax.random.PRNGKey(0)
    kx, kp = jax.random.split(key)
    x = jax.random.normal(kx, (N, C, H, W), jnp.float32)
    params = _make_params(kp, C, C, K)

    out = jax.block_until_ready(mobileone_block(x, params, K=K))

    ref = _reference(x, params, K=K)
    np.testing.assert_allclose(np.asarray(out), np.asarray(ref),
                               rtol=1e-4, atol=1e-4)
    print("KERNEL_OK")
</pallas_src>

<mosaic_0001>
module attributes {stable_mosaic.version = 11 : i64} {
  func.func @_mobileone_kernel(%arg0: i32, %arg1: i32, %arg2: memref<1x18x18x128xf32, #tpu.memory_space<vmem>>, %arg3: memref<1152x128xf32, #tpu.memory_space<vmem>>, %arg4: memref<1x128xf32, #tpu.memory_space<vmem>>, %arg5: memref<1x8x16x128xf32, #tpu.memory_space<vmem>>) attributes {dimension_semantics = [#tpu.dimension_semantics<parallel>, #tpu.dimension_semantics<parallel>], iteration_bounds = array<i64: 2, 2>, scalar_prefetch = 0 : i64, scratch_operands = 0 : i64, tpu.core_type = #tpu.core_type<tc>, window_params = [{transform_indices = @transform_0, window_bounds = array<i64: 1, 18, 18, 128>}, {pipeline_mode = #tpu.pipeline_mode<synchronous>, transform_indices = @transform_1, window_bounds = array<i64: 1152, 128>}, {pipeline_mode = #tpu.pipeline_mode<synchronous>, transform_indices = @transform_2, window_bounds = array<i64: 1, 128>}, {transform_indices = @transform_3, window_bounds = array<i64: 1, 8, 16, 128>}]} {
    %c8_i32 = arith.constant 8 : i32
    %0 = arith.muli %arg1, %c8_i32 : i32
    %1 = tpu.assume_multiple %0, 8 : i32
    %c0_i32 = arith.constant 0 : i32
    %2 = arith.addi %1, %c0_i32 : i32
    %c0 = arith.constant 0 : index
    %3 = arith.index_cast %2 : i32 to index
    %c0_0 = arith.constant 0 : index
    %c0_1 = arith.constant 0 : index
    %4 = vector.load %arg2[%c0, %3, %c0_0, %c0_1] : memref<1x18x18x128xf32, #tpu.memory_space<vmem>>, vector<1x8x16x128xf32>
    %5 = vector.shape_cast %4 : vector<1x8x16x128xf32> to vector<8x16x128xf32>
    %c0_i32_2 = arith.constant 0 : i32
    %6 = arith.addi %1, %c0_i32_2 : i32
    %c0_3 = arith.constant 0 : index
    %7 = arith.index_cast %6 : i32 to index
    %c1 = arith.constant 1 : index
    %c0_4 = arith.constant 0 : index
    %8 = vector.load %arg2[%c0_3, %7, %c1, %c0_4] : memref<1x18x18x128xf32, #tpu.memory_space<vmem>>, vector<1x8x16x128xf32>
    %9 = vector.shape_cast %8 : vector<1x8x16x128xf32> to vector<8x16x128xf32>
    %c0_i32_5 = arith.constant 0 : i32
    %10 = arith.addi %1, %c0_i32_5 : i32
    %c0_6 = arith.constant 0 : index
    %11 = arith.index_cast %10 : i32 to index
    %c2 = arith.constant 2 : index
    %c0_7 = arith.constant 0 : index
    %12 = vector.load %arg2[%c0_6, %11, %c2, %c0_7] : memref<1x18x18x128xf32, #tpu.memory_space<vmem>>, vector<1x8x16x128xf32>
    %13 = vector.shape_cast %12 : vector<1x8x16x128xf32> to vector<8x16x128xf32>
    %c1_i32 = arith.constant 1 : i32
    %14 = arith.addi %1, %c1_i32 : i32
    %c0_8 = arith.constant 0 : index
    %15 = arith.index_cast %14 : i32 to index
    %c0_9 = arith.constant 0 : index
    %c0_10 = arith.constant 0 : index
    %16 = vector.load %arg2[%c0_8, %15, %c0_9, %c0_10] : memref<1x18x18x128xf32, #tpu.memory_space<vmem>>, vector<1x8x16x128xf32>
    %17 = vector.shape_cast %16 : vector<1x8x16x128xf32> to vector<8x16x128xf32>
    %c1_i32_11 = arith.constant 1 : i32
    %18 = arith.addi %1, %c1_i32_11 : i32
    %c0_12 = arith.constant 0 : index
    %19 = arith.index_cast %18 : i32 to index
    %c1_13 = arith.constant 1 : index
    %c0_14 = arith.constant 0 : index
    %20 = vector.load %arg2[%c0_12, %19, %c1_13, %c0_14] : memref<1x18x18x128xf32, #tpu.memory_space<vmem>>, vector<1x8x16x128xf32>
    %21 = vector.shape_cast %20 : vector<1x8x16x128xf32> to vector<8x16x128xf32>
    %c1_i32_15 = arith.constant 1 : i32
    %22 = arith.addi %1, %c1_i32_15 : i32
    %c0_16 = arith.constant 0 : index
    %23 = arith.index_cast %22 : i32 to index
    %c2_17 = arith.constant 2 : index
    %c0_18 = arith.constant 0 : index
    %24 = vector.load %arg2[%c0_16, %23, %c2_17, %c0_18] : memref<1x18x18x128xf32, #tpu.memory_space<vmem>>, vector<1x8x16x128xf32>
    %25 = vector.shape_cast %24 : vector<1x8x16x128xf32> to vector<8x16x128xf32>
    %c2_i32 = arith.constant 2 : i32
    %26 = arith.addi %1, %c2_i32 : i32
    %c0_19 = arith.constant 0 : index
    %27 = arith.index_cast %26 : i32 to index
    %c0_20 = arith.constant 0 : index
    %c0_21 = arith.constant 0 : index
    %28 = vector.load %arg2[%c0_19, %27, %c0_20, %c0_21] : memref<1x18x18x128xf32, #tpu.memory_space<vmem>>, vector<1x8x16x128xf32>
    %29 = vector.shape_cast %28 : vector<1x8x16x128xf32> to vector<8x16x128xf32>
    %c2_i32_22 = arith.constant 2 : i32
    %30 = arith.addi %1, %c2_i32_22 : i32
    %c0_23 = arith.constant 0 : index
    %31 = arith.index_cast %30 : i32 to index
    %c1_24 = arith.constant 1 : index
    %c0_25 = arith.constant 0 : index
    %32 = vector.load %arg2[%c0_23, %31, %c1_24, %c0_25] : memref<1x18x18x128xf32, #tpu.memory_space<vmem>>, vector<1x8x16x128xf32>
    %33 = vector.shape_cast %32 : vector<1x8x16x128xf32> to vector<8x16x128xf32>
    %c2_i32_26 = arith.constant 2 : i32
    %34 = arith.addi %1, %c2_i32_26 : i32
    %c0_27 = arith.constant 0 : index
    %35 = arith.index_cast %34 : i32 to index
    %c2_28 = arith.constant 2 : index
    %c0_29 = arith.constant 0 : index
    %36 = vector.load %arg2[%c0_27, %35, %c2_28, %c0_29] : memref<1x18x18x128xf32, #tpu.memory_space<vmem>>, vector<1x8x16x128xf32>
    %37 = vector.shape_cast %36 : vector<1x8x16x128xf32> to vector<8x16x128xf32>
    %38 = tpu.concatenate %5, %9, %13, %17, %21, %25, %29, %33, %37 in 2 : vector<8x16x128xf32>, vector<8x16x128xf32>, vector<8x16x128xf32>, vector<8x16x128xf32>, vector<8x16x128xf32>, vector<8x16x128xf32>, vector<8x16x128xf32>, vector<8x16x128xf32>, vector<8x16x128xf32> -> vector<8x16x1152xf32>
    %c0_30 = arith.constant 0 : index
    %c0_31 = arith.constant 0 : index
    %39 = vector.load %arg3[%c0_30, %c0_31] : memref<1152x128xf32, #tpu.memory_space<vmem>>, vector<1152x128xf32>
    %cst = arith.constant dense<0.000000e+00> : vector<8x16x128xf32>
    %40 = tpu.matmul %38, %39, %cst {dimension_numbers = #tpu.dot_dimension_numbers<[2], [0], [0, 1], [1], [0, 0, 0, 1, 1, 1], [], []>} : vector<8x16x1152xf32>, vector<1152x128xf32>, vector<8x16x128xf32> -> vector<8x16x128xf32>
    %c0_32 = arith.constant 0 : index
    %c0_33 = arith.constant 0 : index
    %41 = vector.load %arg4[%c0_32, %c0_33] : memref<1x128xf32, #tpu.memory_space<vmem>>, vector<1x128xf32>
    %42 = vector.shape_cast %41 : vector<1x128xf32> to vector<128xf32>
    %43 = vector.shape_cast %42 : vector<128xf32> to vector<1x1x128xf32>
    %44 = vector.broadcast %43 : vector<1x1x128xf32> to vector<8x16x128xf32>
    %45 = arith.addf %40, %44 : vector<8x16x128xf32>
    %cst_34 = arith.constant 0.000000e+00 : f32
    %46 = vector.broadcast %cst_34 : f32 to vector<8x16x128xf32>
    %47 = arith.maximumf %45, %46 : vector<8x16x128xf32>
    %c0_35 = arith.constant 0 : index
    %c0_36 = arith.constant 0 : index
    %c0_37 = arith.constant 0 : index
    %c0_38 = arith.constant 0 : index
    %48 = vector.load %arg5[%c0_35, %c0_36, %c0_37, %c0_38] : memref<1x8x16x128xf32, #tpu.memory_space<vmem>>, vector<1x8x16x128xf32>
    %49 = vector.shape_cast %48 : vector<1x8x16x128xf32> to vector<8x16x128xf32>
    %50 = vector.shape_cast %47 : vector<8x16x128xf32> to vector<1x8x16x128xf32>
    tpu.vector_store %arg5[%c0_35, %c0_36, %c0_37, %c0_38], %50 {strides = array<i32>} : memref<1x8x16x128xf32, #tpu.memory_space<vmem>>, vector<1x8x16x128xf32>,
    return
  }
  func.func @transform_0(%arg0: i32, %arg1: i32) -> (i32, i32, i32, i32) {
    %c0_i32 = arith.constant 0 : i32
    %c0_i32_0 = arith.constant 0 : i32
    %c0_i32_1 = arith.constant 0 : i32
    %c0_i32_2 = arith.constant 0 : i32
    return %arg0, %c0_i32, %c0_i32_0, %c0_i32_1 : i32, i32, i32, i32
  }
  func.func @transform_1(%arg0: i32, %arg1: i32) -> (i32, i32) {
    %c0_i32 = arith.constant 0 : i32
    %c0_i32_0 = arith.constant 0 : i32
    %c0_i32_1 = arith.constant 0 : i32
    return %c0_i32, %c0_i32_0 : i32, i32
  }
  func.func @transform_2(%arg0: i32, %arg1: i32) -> (i32, i32) {
    %c0_i32 = arith.constant 0 : i32
    %c0_i32_0 = arith.constant 0 : i32
    %c0_i32_1 = arith.constant 0 : i32
    return %c0_i32, %c0_i32_0 : i32, i32
  }
  func.func @transform_3(%arg0: i32, %arg1: i32) -> (i32, i32, i32, i32) {
    %c0_i32 = arith.constant 0 : i32
    %c0_i32_0 = arith.constant 0 : i32
    %c0_i32_1 = arith.constant 0 : i32
    return %arg0, %arg1, %c0_i32, %c0_i32_0 : i32, i32, i32, i32
  }
}

</mosaic_0001>

<llo_original>
// kernel: tpu_custom_call.1
$region0: #{tpu_custom_call.1}
  #allocation0 [shape = 'u32[]', space=smem, size = 0x4, offset = 0x4, fixed_abs, tag = 'smem constant byte address 0x4 - core index']
  #allocation1 [shape = 'u32[144,128]{1,0:T(1,128)}', space=vmem, size = 0x12000, scoped, tag = 'internal scratch']
  %s0 = inlined_call_operand.vmem [shape: f32[2,18,18,128], index: 0, kind: input, shape index: {}]
  %s1 = inlined_call_operand.vmem [shape: f32[1152,128], index: 1, kind: input, shape index: {}]
  %s2 = inlined_call_operand.vmem [shape: f32[1,128], index: 2, kind: input, shape index: {}]
  %s3 = inlined_call_operand.hbm [shape: f32[2,16,16,128], index: 3, kind: output, shape index: {}]
  %s4 = sld [smem:[#allocation0]]
  $region45: #{tpu_custom_call.1} parent=0
    _
  %s6 = ssub.s32 1, %s4
  %s7 = scalar_select 0, %s6, %s4
  $region1: #{tpu_custom_call.1} parent=0
    #allocation2 [shape = 'u8[131072]{0}', space=vmem, size = 0x20000, scoped, tag = 'output window, operand 0']
    #allocation3 [shape = 's32[2]{0}', space=sflag, size = 0x8, scoped, tag = 'scoped memory for tpu_custom_call.1']
    %8 = vsyncpa [#allocation3], 0
    %s9 = scalar_lea.sflag [#allocation3], 1
    %10 = vsyncpa %s9, 0
    loop: start=0, step=1, limit=6
    $region2: #{tpu_custom_call.1} parent=1 // loop_pre_header
      _
    $region3: #{tpu_custom_call.1} parent=1 // loop_header
      %s12 = sphi 0, %s16
      %p13 = scmp.ge.s32.totalorder %s12, 6
      %s19 = sphi 0, %s31
      %s20 = sphi 0, %s27
      %s21 = sphi 0, %s19
      %s22 = sphi 0, %s20
      %s23 = sphi 0, %s21
      %s24 = sphi 0, %s22
      %s34 = sphi 0, %s36
      %s37 = sphi 0, %s34
      %s38 = sphi 0, %s37
      %s54 = sphi 0, %s38
      %s58 = sphi 0, %s58
      %s60 = sphi 0, %s58
      %s61 = sphi 0, %s60
      %s75 = sphi 0, %s61
      %s79 = sphi 0, %s79
      %s81 = sphi 0, %s79
      %s82 = sphi 0, %s81
      %s96 = sphi 0, %s82
      %s104 = sphi 0, %s106
      %s107 = sphi 0, %s104
      %s108 = sphi 0, %s107
      %s124 = sphi 0, %s108
    $region4: #{tpu_custom_call.1} parent=1 // loop_header_branch
      %15 = sbr.rel (%p13) target = $region8
    $region5: #{tpu_custom_call.1} parent=1 // loop_body
      %s17 = ssub.s32 %s12, 1
      %s18 = ssub.s32 %s12, 2
      %s25 = sadd.s32 1, %s20
      %p26 = scmp.ge.s32.totalorder %s25, 2
      %s27 = scalar_select %p26, 0, %s25
      %s28 = sadd.s32 1, %s19
      %s29 = scalar_select %p26, %s28, %s19
      %p30 = scmp.ge.s32.totalorder %s29, 2
      %s31 = scalar_select %p30, 0, %s29
      %s32 = ssub.s32 %s19, %s31
      %p33 = scmp.eq.s32.totalorder %s32, 0
      %s35 = sadd.s32 %s34, 1
      %s36 = scalar_select %p33, %s34, %s35
      %p39 = pneg %p33
      %p40 = scmp.eq.s32.totalorder %s12, 3
      %p41 = por %p39, %p40
      %p42 = scmp.ne.s32.totalorder %s34, %s37
      %p43 = scmp.eq.s32.totalorder %s12, 0
      %p44 = por %p42, %p43
      %p45 = scmp.ne.s32.totalorder %s34, %s37
      %p46 = scmp.eq.s32.totalorder %s17, 3
      %p47 = por %p45, %p46
      %p48 = scmp.ne.s32.totalorder %s37, %s38
      %p49 = scmp.eq.s32.totalorder %s17, 0
      %p50 = por %p48, %p49
      %p51 = scmp.ne.s32.totalorder %s37, %s38
      %p52 = scmp.eq.s32.totalorder %s18, 3
      %p53 = por %p51, %p52
      %p55 = scmp.ne.s32.totalorder %s38, %s54
      %p56 = scmp.eq.s32.totalorder %s18, 0
      %p57 = por %p55, %p56
      %s59 = sadd.s32 %s58, 1
      %p62 = scmp.eq.s32.totalorder %s12, 3
      %p63 = scmp.ne.s32.totalorder %s58, %s60
      %p64 = scmp.eq.s32.totalorder %s12, 0
      %p65 = por %p63, %p64
      %p66 = scmp.ne.s32.totalorder %s58, %s60
      %p67 = scmp.eq.s32.totalorder %s17, 3
      %p68 = por %p66, %p67
      %p69 = scmp.ne.s32.totalorder %s60, %s61
      %p70 = scmp.eq.s32.totalorder %s17, 0
      %p71 = por %p69, %p70
      %p72 = scmp.ne.s32.totalorder %s60, %s61
      %p73 = scmp.eq.s32.totalorder %s18, 3
      %p74 = por %p72, %p73
      %p76 = scmp.ne.s32.totalorder %s61, %s75
      %p77 = scmp.eq.s32.totalorder %s18, 0
      %p78 = por %p76, %p77
      %s80 = sadd.s32 %s79, 1
      %p83 = scmp.eq.s32.totalorder %s12, 3
      %p84 = scmp.ne.s32.totalorder %s79, %s81
      %p85 = scmp.eq.s32.totalorder %s12, 0
      %p86 = por %p84, %p85
      %p87 = scmp.ne.s32.totalorder %s79, %s81
      %p88 = scmp.eq.s32.totalorder %s17, 3
      %p89 = por %p87, %p88
      %p90 = scmp.ne.s32.totalorder %s81, %s82
      %p91 = scmp.eq.s32.totalorder %s17, 0
      %p92 = por %p90, %p91
      %p93 = scmp.ne.s32.totalorder %s81, %s82
      %p94 = scmp.eq.s32.totalorder %s18, 3
      %p95 = por %p93, %p94
      %p97 = scmp.ne.s32.totalorder %s82, %s96
      %p98 = scmp.eq.s32.totalorder %s18, 0
      %p99 = por %p97, %p98
      %s100 = ssub.s32 %s19, %s31
      %s101 = ssub.s32 %s20, %s27
      %s102 = sor.u32 %s100, %s101
      %p103 = scmp.eq.s32.totalorder %s102, 0
      %s105 = sadd.s32 %s104, 1
      %s106 = scalar_select %p103, %s104, %s105
      %p109 = pneg %p103
      %p110 = scmp.eq.s32.totalorder %s12, 3
      %p111 = por %p109, %p110
      %p112 = scmp.ne.s32.totalorder %s104, %s107
      %p113 = scmp.eq.s32.totalorder %s12, 0
      %p114 = por %p112, %p113
      %p115 = scmp.ne.s32.totalorder %s104, %s107
      %p116 = scmp.eq.s32.totalorder %s17, 3
      %p117 = por %p115, %p116
      %p118 = scmp.ne.s32.totalorder %s107, %s108
      %p119 = scmp.eq.s32.totalorder %s17, 0
      %p120 = por %p118, %p119
      %p121 = scmp.ne.s32.totalorder %s107, %s108
      %p122 = scmp.eq.s32.totalorder %s18, 3
      %p123 = por %p121, %p122
      %p125 = scmp.ne.s32.totalorder %s108, %s124
      %p126 = scmp.eq.s32.totalorder %s18, 0
      %p127 = por %p125, %p126
      %p128 = scmp.le.s32.totalorder 1, %s12
      %p129 = scmp.lt.s32.totalorder %s12, 5
      %p130 = pnand %p128, %p129
      %p131 = pneg %p130
      // Predicated region
      $region9: #{tpu_custom_call.1} parent=5 // pred_check
        _
      $region10: #{tpu_custom_call.1} parent=5 // pred_check_branch
        %133 = sbr.rel (%p130) target = $region12
      $region11: #{tpu_custom_call.1} parent=5 // pred_region
        %s134 = ssub.s32 %s12, 1
        // Predicated region
        $region13: #{tpu_custom_call.1} parent=11 // pred_check
          %p135 = pneg %p71
        $region14: #{tpu_custom_call.1} parent=11 // pred_check_branch
          %137 = sbr.rel (%p135) target = $region16
        $region15: #{tpu_custom_call.1} parent=11 // pred_region
          _
        $region16: #{tpu_custom_call.1} parent=11 // pred_fallthru
          _
        // Predicated region
        $region17: #{tpu_custom_call.1} parent=11 // pred_check
          %p138 = pneg %p92
        $region18: #{tpu_custom_call.1} parent=11 // pred_check_branch
          %140 = sbr.rel (%p138) target = $region20
        $region19: #{tpu_custom_call.1} parent=11 // pred_region
          _
        $region20: #{tpu_custom_call.1} parent=11 // pred_fallthru
          _
      $region12: #{tpu_custom_call.1} parent=5 // pred_fallthru
        _
      %p141 = scmp.lt.s32.totalorder %s12, 4
      // Predicated region
      $region21: #{tpu_custom_call.1} parent=5 // pred_check
        %p142 = pneg %p141
      $region22: #{tpu_custom_call.1} parent=5 // pred_check_branch
        %144 = sbr.rel (%p142) target = $region24
      $region23: #{tpu_custom_call.1} parent=5 // pred_region
        // Predicated region
        $region25: #{tpu_custom_call.1} parent=23 // pred_check
          %p145 = pneg %p44
        $region26: #{tpu_custom_call.1} parent=23 // pred_check_branch
          %147 = sbr.rel (%p145) target = $region28
        $region27: #{tpu_custom_call.1} parent=23 // pred_region
          %p148 = scmp.lt.s32.totalorder %s19, 1
          %s149 = scalar_select %p148, %s19, 1
          %s150 = smul.addr %s149, 54
          %s151 = smul.addr %s150, 8
          %s152 = scalar_lea.vmem %s0, %s151
        $region28: #{tpu_custom_call.1} parent=23 // pred_fallthru
          _
      $region24: #{tpu_custom_call.1} parent=5 // pred_fallthru
        _
      %p153 = scmp.le.s32.totalorder 1, %s12
      %p154 = scmp.lt.s32.totalorder %s12, 5
      %p155 = pnand %p153, %p154
      %p156 = pneg %p155
      // Predicated region
      $region29: #{tpu_custom_call.1} parent=5 // pred_check
        _
      $region30: #{tpu_custom_call.1} parent=5 // pred_check_branch
        %158 = sbr.rel (%p155) target = $region32
      $region31: #{tpu_custom_call.1} parent=5 // pred_region
        %s159 = ssub.s32 %s12, 1
        %p160 = scmp.lt.s32.totalorder %s21, 1
        %s161 = scalar_select %p160, %s21, 1
        %s162 = smul.addr %s161, 54
        %s163 = smul.addr %s162, 8
        %s164 = scalar_lea.vmem %s0, %s163
        %p165 = pneg %p50
        %p166 = pneg %p47
        %p167 = pneg %p71
        %p168 = pneg %p68
        %p169 = pneg %p92
        %p170 = pneg %p89
        %p171 = pneg %p120
        %p172 = pneg %p117
        %s173 = sand.u32 %s107, 1
        %s174 = scalar_lea.sflag [#allocation3], %s173
        %s175 = sand.u32 %s107, 1
        %s176 = smul.addr %s175, 128
        %s177 = scalar_lea.vmem [#allocation2], %s176
        %p178 = scmp.lt.s32.totalorder %s21, 1
        %s179 = scalar_select %p178, %s21, 1
        %s180 = smul.addr %s179, 54
        %s181 = smul.addr %s180, 8
        %s182 = scalar_lea.vmem %s0, %s181
        %s183 = smul.u32 8, %s22
        %s184 = smul.u32 %s22, 8
        %s185 = smul.u32 %s184, 24
        %s186 = scalar_lea.vmem %s182, %s185
        %v187 = vld [vmem:[%s186] sm:$0xff]
        %v188 = vld [vmem:[%s186 + $0x8] sm:$0xff]
        %v189 = vld [vmem:[%s186 + $0x18] sm:$0xff]
        %v190 = vld [vmem:[%s186 + $0x20] sm:$0xff]
        %v191 = vld [vmem:[%s186 + $0x30] sm:$0xff]
        %v192 = vld [vmem:[%s186 + $0x38] sm:$0xff]
        %v193 = vld [vmem:[%s186 + $0x48] sm:$0xff]
        %v194 = vld [vmem:[%s186 + $0x50] sm:$0xff]
        %v195 = vld [vmem:[%s186 + $0x60] sm:$0xff]
        %v196 = vld [vmem:[%s186 + $0x68] sm:$0xff]
        %v197 = vld [vmem:[%s186 + $0x78] sm:$0xff]
        %v198 = vld [vmem:[%s186 + $0x80] sm:$0xff]
        %v199 = vld [vmem:[%s186 + $0x90] sm:$0xff]
        %v200 = vld [vmem:[%s186 + $0x98] sm:$0xff]
        %v201 = vld [vmem:[%s186 + $0xa8] sm:$0xff]
        %v202 = vld [vmem:[%s186 + $0xb0] sm:$0xff]
        %v203 = vld [vmem:[%s186 + $0x1] sm:$0xff]
        %v204 = vld [vmem:[%s186 + $0x9] sm:$0xff]
        %v205 = vld [vmem:[%s186 + $0x19] sm:$0xff]
        %v206 = vld [vmem:[%s186 + $0x21] sm:$0xff]
        %v207 = vld [vmem:[%s186 + $0x31] sm:$0xff]
        %v208 = vld [vmem:[%s186 + $0x39] sm:$0xff]
        %v209 = vld [vmem:[%s186 + $0x49] sm:$0xff]
        %v210 = vld [vmem:[%s186 + $0x51] sm:$0xff]
        %v211 = vld [vmem:[%s186 + $0x61] sm:$0xff]
        %v212 = vld [vmem:[%s186 + $0x69] sm:$0xff]
        %v213 = vld [vmem:[%s186 + $0x79] sm:$0xff]
        %v214 = vld [vmem:[%s186 + $0x81] sm:$0xff]
        %v215 = vld [vmem:[%s186 + $0x91] sm:$0xff]
        %v216 = vld [vmem:[%s186 + $0x99] sm:$0xff]
        %v217 = vld [vmem:[%s186 + $0xa9] sm:$0xff]
        %v218 = vld [vmem:[%s186 + $0xb1] sm:$0xff]
        %v219 = vld [vmem:[%s186 + $0x2] sm:$0xff]
        %v220 = vld [vmem:[%s186 + $0xa] sm:$0xff]
        %v221 = vld [vmem:[%s186 + $0x1a] sm:$0xff]
        %v222 = vld [vmem:[%s186 + $0x22] sm:$0xff]
        %v223 = vld [vmem:[%s186 + $0x32] sm:$0xff]
        %v224 = vld [vmem:[%s186 + $0x3a] sm:$0xff]
        %v225 = vld [vmem:[%s186 + $0x4a] sm:$0xff]
        %v226 = vld [vmem:[%s186 + $0x52] sm:$0xff]
        %v227 = vld [vmem:[%s186 + $0x62] sm:$0xff]
        %v228 = vld [vmem:[%s186 + $0x6a] sm:$0xff]
        %v229 = vld [vmem:[%s186 + $0x7a] sm:$0xff]
        %v230 = vld [vmem:[%s186 + $0x82] sm:$0xff]
        %v231 = vld [vmem:[%s186 + $0x92] sm:$0xff]
        %v232 = vld [vmem:[%s186 + $0x9a] sm:$0xff]
        %v233 = vld [vmem:[%s186 + $0xaa] sm:$0xff]
        %v234 = vld [vmem:[%s186 + $0xb2] sm:$0xff]
        %s235 = sadd.s32 %s184, 1
        %s236 = smul.u32 %s235, 24
        %s237 = scalar_lea.vmem %s182, %s236
        %v238 = vld [vmem:[%s237] sm:$0xff]
        %v239 = vld [vmem:[%s237 + $0x8] sm:$0xff]
        %v240 = vld [vmem:[%s237 + $0x18] sm:$0xff]
        %v241 = vld [vmem:[%s237 + $0x20] sm:$0xff]
        %v242 = vld [vmem:[%s237 + $0x30] sm:$0xff]
        %v243 = vld [vmem:[%s237 + $0x38] sm:$0xff]
        %v244 = vld [vmem:[%s237 + $0x48] sm:$0xff]
        %v245 = vld [vmem:[%s237 + $0x50] sm:$0xff]
        %v246 = vld [vmem:[%s237 + $0x60] sm:$0xff]
        %v247 = vld [vmem:[%s237 + $0x68] sm:$0xff]
        %v248 = vld [vmem:[%s237 + $0x78] sm:$0xff]
        %v249 = vld [vmem:[%s237 + $0x80] sm:$0xff]
        %v250 = vld [vmem:[%s237 + $0x90] sm:$0xff]
        %v251 = vld [vmem:[%s237 + $0x98] sm:$0xff]
        %v252 = vld [vmem:[%s237 + $0xa8] sm:$0xff]
        %v253 = vld [vmem:[%s237 + $0xb0] sm:$0xff]
        %v254 = vld [vmem:[%s237 + $0x1] sm:$0xff]
        %v255 = vld [vmem:[%s237 + $0x9] sm:$0xff]
        %v256 = vld [vmem:[%s237 + $0x19] sm:$0xff]
        %v257 = vld [vmem:[%s237 + $0x21] sm:$0xff]
        %v258 = vld [vmem:[%s237 + $0x31] sm:$0xff]
        %v259 = vld [vmem:[%s237 + $0x39] sm:$0xff]
        %v260 = vld [vmem:[%s237 + $0x49] sm:$0xff]
        %v261 = vld [vmem:[%s237 + $0x51] sm:$0xff]
        %v262 = vld [vmem:[%s237 + $0x61] sm:$0xff]
        %v263 = vld [vmem:[%s237 + $0x69] sm:$0xff]
        %v264 = vld [vmem:[%s237 + $0x79] sm:$0xff]
        %v265 = vld [vmem:[%s237 + $0x81] sm:$0xff]
        %v266 = vld [vmem:[%s237 + $0x91] sm:$0xff]
        %v267 = vld [vmem:[%s237 + $0x99] sm:$0xff]
        %v268 = vld [vmem:[%s237 + $0xa9] sm:$0xff]
        %v269 = vld [vmem:[%s237 + $0xb1] sm:$0xff]
        %v270 = vld [vmem:[%s237 + $0x2] sm:$0xff]
        %v271 = vld [vmem:[%s237 + $0xa] sm:$0xff]
        %v272 = vld [vmem:[%s237 + $0x1a] sm:$0xff]
        %v273 = vld [vmem:[%s237 + $0x22] sm:$0xff]
        %v274 = vld [vmem:[%s237 + $0x32] sm:$0xff]
        %v275 = vld [vmem:[%s237 + $0x3a] sm:$0xff]
        %v276 = vld [vmem:[%s237 + $0x4a] sm:$0xff]
        %v277 = vld [vmem:[%s237 + $0x52] sm:$0xff]
        %v278 = vld [vmem:[%s237 + $0x62] sm:$0xff]
        %v279 = vld [vmem:[%s237 + $0x6a] sm:$0xff]
        %v280 = vld [vmem:[%s237 + $0x7a] sm:$0xff]
        %v281 = vld [vmem:[%s237 + $0x82] sm:$0xff]
        %v282 = vld [vmem:[%s237 + $0x92] sm:$0xff]
        %v283 = vld [vmem:[%s237 + $0x9a] sm:$0xff]
        %v284 = vld [vmem:[%s237 + $0xaa] sm:$0xff]
        %v285 = vld [vmem:[%s237 + $0xb2] sm:$0xff]
        %s286 = sadd.s32 %s184, 2
        %s287 = smul.u32 %s286, 24
        %s288 = scalar_lea.vmem %s182, %s287
        %v289 = vld [vmem:[%s288] sm:$0xff]
        %v290 = vld [vmem:[%s288 + $0x8] sm:$0xff]
        %v291 = vld [vmem:[%s288 + $0x18] sm:$0xff]
        %v292 = vld [vmem:[%s288 + $0x20] sm:$0xff]
        %v293 = vld [vmem:[%s288 + $0x30] sm:$0xff]
        %v294 = vld [vmem:[%s288 + $0x38] sm:$0xff]
        %v295 = vld [vmem:[%s288 + $0x48] sm:$0xff]
        %v296 = vld [vmem:[%s288 + $0x50] sm:$0xff]
        %v297 = vld [vmem:[%s288 + $0x60] sm:$0xff]
        %v298 = vld [vmem:[%s288 + $0x68] sm:$0xff]
        %v299 = vld [vmem:[%s288 + $0x78] sm:$0xff]
        %v300 = vld [vmem:[%s288 + $0x80] sm:$0xff]
        %v301 = vld [vmem:[%s288 + $0x90] sm:$0xff]
        %v302 = vld [vmem:[%s288 + $0x98] sm:$0xff]
        %v303 = vld [vmem:[%s288 + $0xa8] sm:$0xff]
        %v304 = vld [vmem:[%s288 + $0xb0] sm:$0xff]
        %v305 = vld [vmem:[%s288 + $0x1] sm:$0xff]
        %v306 = vld [vmem:[%s288 + $0x9] sm:$0xff]
        %v307 = vld [vmem:[%s288 + $0x19] sm:$0xff]
        %v308 = vld [vmem:[%s288 + $0x21] sm:$0xff]
        %v309 = vld [vmem:[%s288 + $0x31] sm:$0xff]
        %v310 = vld [vmem:[%s288 + $0x39] sm:$0xff]
        %v311 = vld [vmem:[%s288 + $0x49] sm:$0xff]
        %v312 = vld [vmem:[%s288 + $0x51] sm:$0xff]
        %v313 = vld [vmem:[%s288 + $0x61] sm:$0xff]
        %v314 = vld [vmem:[%s288 + $0x69] sm:$0xff]
        %v315 = vld [vmem:[%s288 + $0x79] sm:$0xff]
        %v316 = vld [vmem:[%s288 + $0x81] sm:$0xff]
        %v317 = vld [vmem:[%s288 + $0x91] sm:$0xff]
        %v318 = vld [vmem:[%s288 + $0x99] sm:$0xff]
        %v319 = vld [vmem:[%s288 + $0xa9] sm:$0xff]
        %v320 = vld [vmem:[%s288 + $0xb1] sm:$0xff]
        %v321 = vld [vmem:[%s288 + $0x2] sm:$0xff]
        %v322 = vld [vmem:[%s288 + $0xa] sm:$0xff]
        %v323 = vld [vmem:[%s288 + $0x1a] sm:$0xff]
        %v324 = vld [vmem:[%s288 + $0x22] sm:$0xff]
        %v325 = vld [vmem:[%s288 + $0x32] sm:$0xff]
        %v326 = vld [vmem:[%s288 + $0x3a] sm:$0xff]
        %v327 = vld [vmem:[%s288 + $0x4a] sm:$0xff]
        %v328 = vld [vmem:[%s288 + $0x52] sm:$0xff]
        %v329 = vld [vmem:[%s288 + $0x62] sm:$0xff]
        %v330 = vld [vmem:[%s288 + $0x6a] sm:$0xff]
        %v331 = vld [vmem:[%s288 + $0x7a] sm:$0xff]
        %v332 = vld [vmem:[%s288 + $0x82] sm:$0xff]
        %v333 = vld [vmem:[%s288 + $0x92] sm:$0xff]
        %v334 = vld [vmem:[%s288 + $0x9a] sm:$0xff]
        %v335 = vld [vmem:[%s288 + $0xaa] sm:$0xff]
        %v336 = vld [vmem:[%s288 + $0xb2] sm:$0xff]
        %v337 = vld [vmem:[%s1] sm:$0xff]
        %v338 = vld [vmem:[%s1 + $0x8] sm:$0xff]
        %v339 = vld [vmem:[%s1 + $0x10] sm:$0xff]
        %v340 = vld [vmem:[%s1 + $0x18] sm:$0xff]
        %v341 = vld [vmem:[%s1 + $0x20] sm:$0xff]
        %v342 = vld [vmem:[%s1 + $0x28] sm:$0xff]
        %v343 = vld [vmem:[%s1 + $0x30] sm:$0xff]
        %v344 = vld [vmem:[%s1 + $0x38] sm:$0xff]
        %v345 = vld [vmem:[%s1 + $0x40] sm:$0xff]
        %v346 = vld [vmem:[%s1 + $0x48] sm:$0xff]
        %v347 = vld [vmem:[%s1 + $0x50] sm:$0xff]
        %v348 = vld [vmem:[%s1 + $0x58] sm:$0xff]
        %v349 = vld [vmem:[%s1 + $0x60] sm:$0xff]
        %v350 = vld [vmem:[%s1 + $0x68] sm:$0xff]
        %v351 = vld [vmem:[%s1 + $0x70] sm:$0xff]
        %v352 = vld [vmem:[%s1 + $0x78] sm:$0xff]
        %v353 = vld [vmem:[%s1 + $0x80] sm:$0xff]
        %v354 = vld [vmem:[%s1 + $0x88] sm:$0xff]
        %v355 = vld [vmem:[%s1 + $0x90] sm:$0xff]
        %v356 = vld [vmem:[%s1 + $0x98] sm:$0xff]
        %v357 = vld [vmem:[%s1 + $0xa0] sm:$0xff]
        %v358 = vld [vmem:[%s1 + $0xa8] sm:$0xff]
        %v359 = vld [vmem:[%s1 + $0xb0] sm:$0xff]
        %v360 = vld [vmem:[%s1 + $0xb8] sm:$0xff]
        %v361 = vld [vmem:[%s1 + $0xc0] sm:$0xff]
        %v362 = vld [vmem:[%s1 + $0xc8] sm:$0xff]
        %v363 = vld [vmem:[%s1 + $0xd0] sm:$0xff]
        %v364 = vld [vmem:[%s1 + $0xd8] sm:$0xff]
        %v365 = vld [vmem:[%s1 + $0xe0] sm:$0xff]
        %v366 = vld [vmem:[%s1 + $0xe8] sm:$0xff]
        %v367 = vld [vmem:[%s1 + $0xf0] sm:$0xff]
        %v368 = vld [vmem:[%s1 + $0xf8] sm:$0xff]
        %v369 = vld [vmem:[%s1 + $0x100] sm:$0xff]
        %v370 = vld [vmem:[%s1 + $0x108] sm:$0xff]
        %v371 = vld [vmem:[%s1 + $0x110] sm:$0xff]
        %v372 = vld [vmem:[%s1 + $0x118] sm:$0xff]
        %v373 = vld [vmem:[%s1 + $0x120] sm:$0xff]
        %v374 = vld [vmem:[%s1 + $0x128] sm:$0xff]
        %v375 = vld [vmem:[%s1 + $0x130] sm:$0xff]
        %v376 = vld [vmem:[%s1 + $0x138] sm:$0xff]
        %v377 = vld [vmem:[%s1 + $0x140] sm:$0xff]
        %v378 = vld [vmem:[%s1 + $0x148] sm:$0xff]
        %v379 = vld [vmem:[%s1 + $0x150] sm:$0xff]
        %v380 = vld [vmem:[%s1 + $0x158] sm:$0xff]
        %v381 = vld [vmem:[%s1 + $0x160] sm:$0xff]
        %v382 = vld [vmem:[%s1 + $0x168] sm:$0xff]
        %v383 = vld [vmem:[%s1 + $0x170] sm:$0xff]
        %v384 = vld [vmem:[%s1 + $0x178] sm:$0xff]
        %v385 = vld [vmem:[%s1 + $0x180] sm:$0xff]
        %v386 = vld [vmem:[%s1 + $0x188] sm:$0xff]
        %v387 = vld [vmem:[%s1 + $0x190] sm:$0xff]
        %v388 = vld [vmem:[%s1 + $0x198] sm:$0xff]
        %v389 = vld [vmem:[%s1 + $0x1a0] sm:$0xff]
        %v390 = vld [vmem:[%s1 + $0x1a8] sm:$0xff]
        %v391 = vld [vmem:[%s1 + $0x1b0] sm:$0xff]
        %v392 = vld [vmem:[%s1 + $0x1b8] sm:$0xff]
        %v393 = vld [vmem:[%s1 + $0x1c0] sm:$0xff]
        %v394 = vld [vmem:[%s1 + $0x1c8] sm:$0xff]
        %v395 = vld [vmem:[%s1 + $0x1d0] sm:$0xff]
        %v396 = vld [vmem:[%s1 + $0x1d8] sm:$0xff]
        %v397 = vld [vmem:[%s1 + $0x1e0] sm:$0xff]
        %v398 = vld [vmem:[%s1 + $0x1e8] sm:$0xff]
        %v399 = vld [vmem:[%s1 + $0x1f0] sm:$0xff]
        %v400 = vld [vmem:[%s1 + $0x1f8] sm:$0xff]
        %v401 = vld [vmem:[%s1 + $0x200] sm:$0xff]
        %v402 = vld [vmem:[%s1 + $0x208] sm:$0xff]
        %v403 = vld [vmem:[%s1 + $0x210] sm:$0xff]
        %v404 = vld [vmem:[%s1 + $0x218] sm:$0xff]
        %v405 = vld [vmem:[%s1 + $0x220] sm:$0xff]
        %v406 = vld [vmem:[%s1 + $0x228] sm:$0xff]
        %v407 = vld [vmem:[%s1 + $0x230] sm:$0xff]
        %v408 = vld [vmem:[%s1 + $0x238] sm:$0xff]
        %v409 = vld [vmem:[%s1 + $0x240] sm:$0xff]
        %v410 = vld [vmem:[%s1 + $0x248] sm:$0xff]
        %v411 = vld [vmem:[%s1 + $0x250] sm:$0xff]
        %v412 = vld [vmem:[%s1 + $0x258] sm:$0xff]
        %v413 = vld [vmem:[%s1 + $0x260] sm:$0xff]
        %v414 = vld [vmem:[%s1 + $0x268] sm:$0xff]
        %v415 = vld [vmem:[%s1 + $0x270] sm:$0xff]
        %v416 = vld [vmem:[%s1 + $0x278] sm:$0xff]
        %v417 = vld [vmem:[%s1 + $0x280] sm:$0xff]
        %v418 = vld [vmem:[%s1 + $0x288] sm:$0xff]
        %v419 = vld [vmem:[%s1 + $0x290] sm:$0xff]
        %v420 = vld [vmem:[%s1 + $0x298] sm:$0xff]
        %v421 = vld [vmem:[%s1 + $0x2a0] sm:$0xff]
        %v422 = vld [vmem:[%s1 + $0x2a8] sm:$0xff]
        %v423 = vld [vmem:[%s1 + $0x2b0] sm:$0xff]
        %v424 = vld [vmem:[%s1 + $0x2b8] sm:$0xff]
        %v425 = vld [vmem:[%s1 + $0x2c0] sm:$0xff]
        %v426 = vld [vmem:[%s1 + $0x2c8] sm:$0xff]
        %v427 = vld [vmem:[%s1 + $0x2d0] sm:$0xff]
        %v428 = vld [vmem:[%s1 + $0x2d8] sm:$0xff]
        %v429 = vld [vmem:[%s1 + $0x2e0] sm:$0xff]
        %v430 = vld [vmem:[%s1 + $0x2e8] sm:$0xff]
        %v431 = vld [vmem:[%s1 + $0x2f0] sm:$0xff]
        %v432 = vld [vmem:[%s1 + $0x2f8] sm:$0xff]
        %v433 = vld [vmem:[%s1 + $0x300] sm:$0xff]
        %v434 = vld [vmem:[%s1 + $0x308] sm:$0xff]
        %v435 = vld [vmem:[%s1 + $0x310] sm:$0xff]
        %v436 = vld [vmem:[%s1 + $0x318] sm:$0xff]
        %v437 = vld [vmem:[%s1 + $0x320] sm:$0xff]
        %v438 = vld [vmem:[%s1 + $0x328] sm:$0xff]
        %v439 = vld [vmem:[%s1 + $0x330] sm:$0xff]
        %v440 = vld [vmem:[%s1 + $0x338] sm:$0xff]
        %v441 = vld [vmem:[%s1 + $0x340] sm:$0xff]
        %v442 = vld [vmem:[%s1 + $0x348] sm:$0xff]
        %v443 = vld [vmem:[%s1 + $0x350] sm:$0xff]
        %v444 = vld [vmem:[%s1 + $0x358] sm:$0xff]
        %v445 = vld [vmem:[%s1 + $0x360] sm:$0xff]
        %v446 = vld [vmem:[%s1 + $0x368] sm:$0xff]
        %v447 = vld [vmem:[%s1 + $0x370] sm:$0xff]
        %v448 = vld [vmem:[%s1 + $0x378] sm:$0xff]
        %v449 = vld [vmem:[%s1 + $0x380] sm:$0xff]
        %v450 = vld [vmem:[%s1 + $0x388] sm:$0xff]
        %v451 = vld [vmem:[%s1 + $0x390] sm:$0xff]
        %v452 = vld [vmem:[%s1 + $0x398] sm:$0xff]
        %v453 = vld [vmem:[%s1 + $0x3a0] sm:$0xff]
        %v454 = vld [vmem:[%s1 + $0x3a8] sm:$0xff]
        %v455 = vld [vmem:[%s1 + $0x3b0] sm:$0xff]
        %v456 = vld [vmem:[%s1 + $0x3b8] sm:$0xff]
        %v457 = vld [vmem:[%s1 + $0x3c0] sm:$0xff]
        %v458 = vld [vmem:[%s1 + $0x3c8] sm:$0xff]
        %v459 = vld [vmem:[%s1 + $0x3d0] sm:$0xff]
        %v460 = vld [vmem:[%s1 + $0x3d8] sm:$0xff]
        %v461 = vld [vmem:[%s1 + $0x3e0] sm:$0xff]
        %v462 = vld [vmem:[%s1 + $0x3e8] sm:$0xff]
        %v463 = vld [vmem:[%s1 + $0x3f0] sm:$0xff]
        %v464 = vld [vmem:[%s1 + $0x3f8] sm:$0xff]
        %v465 = vld [vmem:[%s1 + $0x400] sm:$0xff]
        %v466 = vld [vmem:[%s1 + $0x408] sm:$0xff]
        %v467 = vld [vmem:[%s1 + $0x410] sm:$0xff]
        %v468 = vld [vmem:[%s1 + $0x418] sm:$0xff]
        %v469 = vld [vmem:[%s1 + $0x420] sm:$0xff]
        %v470 = vld [vmem:[%s1 + $0x428] sm:$0xff]
        %v471 = vld [vmem:[%s1 + $0x430] sm:$0xff]
        %v472 = vld [vmem:[%s1 + $0x438] sm:$0xff]
        %v473 = vld [vmem:[%s1 + $0x440] sm:$0xff]
        %v474 = vld [vmem:[%s1 + $0x448] sm:$0xff]
        %v475 = vld [vmem:[%s1 + $0x450] sm:$0xff]
        %v476 = vld [vmem:[%s1 + $0x458] sm:$0xff]
        %v477 = vld [vmem:[%s1 + $0x460] sm:$0xff]
        %v478 = vld [vmem:[%s1 + $0x468] sm:$0xff]
        %v479 = vld [vmem:[%s1 + $0x470] sm:$0xff]
        %v480 = vld [vmem:[%s1 + $0x478] sm:$0xff]
        %v481 = vld [vmem:[%s2] sm:$0x1]
        %v483 = vlaneseq
        %v484 = vshrl.u32 %v483, 7
        %v485 = vsub.s32 0, %v484
        %v486 = vrot.slane %v481, %v485
        %488 = vmatprep.subr.mxu0 0.0
        %489 = vmatpush1.msra.mxu0 %v337
        %490 = vmatprep.subr.mxu0 0.0
        %491 = vmatpush1.msra.mxu0 %v338
        %492 = vmatprep.subr.mxu0 0.0
        %493 = vmatpush1.msra.mxu0 %v339
        %494 = vmatprep.subr.mxu0 0.0
        %495 = vmatpush1.msra.mxu0 %v340
        %496 = vmatprep.subr.mxu0 0.0
        %497 = vmatpush1.msra.mxu0 %v341
        %498 = vmatprep.subr.mxu0 0.0
        %499 = vmatpush1.msra.mxu0 %v342
        %500 = vmatprep.subr.mxu0 0.0
        %501 = vmatpush1.msra.mxu0 %v343
        %502 = vmatprep.subr.mxu0 0.0
        %503 = vmatpush1.msra.mxu0 %v344
        %504 = vmatprep.subr.mxu0 0.0
        %505 = vmatpush1.msra.mxu0 %v345
        %506 = vmatprep.subr.mxu0 0.0
        %507 = vmatpush1.msra.mxu0 %v346
        %508 = vmatprep.subr.mxu0 0.0
        %509 = vmatpush1.msra.mxu0 %v347
        %510 = vmatprep.subr.mxu0 0.0
        %511 = vmatpush1.msra.mxu0 %v348
        %512 = vmatprep.subr.mxu0 0.0
        %513 = vmatpush1.msra.mxu0 %v349
        %514 = vmatprep.subr.mxu0 0.0
        %515 = vmatpush1.msra.mxu0 %v350
        %516 = vmatprep.subr.mxu0 0.0
        %517 = vmatpush1.msra.mxu0 %v351
        %518 = vmatprep.subr.mxu0 0.0
        %519 = vmatpush1.msra.mxu0 %v352
        %520 = vmatprep.subr.mxu0 0.0
        %521 = vmatpush1.msra.mxu0 %v353
        %522 = vmatprep.subr.mxu0 0.0
        %523 = vmatpush1.msra.mxu0 %v354
        %524 = vmatprep.subr.mxu0 0.0
        %525 = vmatpush1.msra.mxu0 %v355
        %526 = vmatprep.subr.mxu0 0.0
        %527 = vmatpush1.msra.mxu0 %v356
        %528 = vmatprep.subr.mxu0 0.0
        %529 = vmatpush1.msra.mxu0 %v357
        %530 = vmatprep.subr.mxu0 0.0
        %531 = vmatpush1.msra.mxu0 %v358
        %532 = vmatprep.subr.mxu0 0.0
        %533 = vmatpush1.msra.mxu0 %v359
        %534 = vmatprep.subr.mxu0 0.0
        %535 = vmatpush1.msra.mxu0 %v360
        %536 = vmatprep.subr.mxu0 0.0
        %537 = vmatpush1.msra.mxu0 %v361
        %538 = vmatprep.subr.mxu0 0.0
        %539 = vmatpush1.msra.mxu0 %v362
        %540 = vmatprep.subr.mxu0 0.0
        %541 = vmatpush1.msra.mxu0 %v363
        %542 = vmatprep.subr.mxu0 0.0
        %543 = vmatpush1.msra.mxu0 %v364
        %544 = vmatprep.subr.mxu0 0.0
        %545 = vmatpush1.msra.mxu0 %v365
        %546 = vmatprep.subr.mxu0 0.0
        %547 = vmatpush1.msra.mxu0 %v366
        %548 = vmatprep.subr.mxu0 0.0
        %549 = vmatpush1.msra.mxu0 %v367
        %550 = vmatprep.subr.mxu0 0.0
        %551 = vmatpush1.msra.mxu0 %v368
        %552 = vmatprep.mubr.f32.mxu0 %v203
        %553 = vmatmul.mubr.f32.gmra.mrb[0].mxu0 %v187
        %v554 = vpop.f32.mrb[0].mxu0
        %v555 = vadd.f32 %v486, %v554
        %v556 = vpop.f32.mrb[0].mxu0
        %557 = vmatprep.mubr.f32.mxu0 %v204
        %558 = vmatmul.mubr.f32.gmra.mrb[0].mxu0 %v188
        %v559 = vpop.f32.mrb[0].mxu0
        %v560 = vadd.f32 %v486, %v559
        %v561 = vpop.f32.mrb[0].mxu0
        %562 = vmatprep.mubr.f32.mxu0 %v205
        %563 = vmatmul.mubr.f32.gmra.mrb[0].mxu0 %v189
        %v564 = vpop.f32.mrb[0].mxu0
        %v565 = vadd.f32 %v486, %v564
        %v566 = vpop.f32.mrb[0].mxu0
        %567 = vmatprep.mubr.f32.mxu0 %v206
        %568 = vmatmul.mubr.f32.gmra.mrb[0].mxu0 %v190
        %v569 = vpop.f32.mrb[0].mxu0
        %v570 = vadd.f32 %v486, %v569
        %v571 = vpop.f32.mrb[0].mxu0
        %572 = vmatprep.mubr.f32.mxu0 %v207
        %573 = vmatmul.mubr.f32.gmra.mrb[0].mxu0 %v191
        %v574 = vpop.f32.mrb[0].mxu0
        %v575 = vadd.f32 %v486, %v574
        %v576 = vpop.f32.mrb[0].mxu0
        %577 = vmatprep.mubr.f32.mxu0 %v208
        %578 = vmatmul.mubr.f32.gmra.mrb[0].mxu0 %v192
        %v579 = vpop.f32.mrb[0].mxu0
        %v580 = vadd.f32 %v486, %v579
        %v581 = vpop.f32.mrb[0].mxu0
        %582 = vmatprep.mubr.f32.mxu0 %v209
        %583 = vmatmul.mubr.f32.gmra.mrb[0].mxu0 %v193
        %v584 = vpop.f32.mrb[0].mxu0
        %v585 = vadd.f32 %v486, %v584
        %v586 = vpop.f32.mrb[0].mxu0
        %587 = vmatprep.mubr.f32.mxu0 %v210
        %588 = vmatmul.mubr.f32.gmra.mrb[0].mxu0 %v194
        %v589 = vpop.f32.mrb[0].mxu0
        %v590 = vadd.f32 %v486, %v589
        %v591 = vpop.f32.mrb[0].mxu0
        %592 = vmatprep.mubr.f32.mxu0 %v211
        %593 = vmatmul.mubr.f32.gmra.mrb[0].mxu0 %v195
        %v594 = vpop.f32.mrb[0].mxu0
        %v595 = vadd.f32 %v486, %v594
        %v596 = vpop.f32.mrb[0].mxu0
        %597 = vmatprep.mubr.f32.mxu0 %v212
        %598 = vmatmul.mubr.f32.gmra.mrb[0].mxu0 %v196
        %v599 = vpop.f32.mrb[0].mxu0
        %v600 = vadd.f32 %v486, %v599
        %v601 = vpop.f32.mrb[0].mxu0
        %602 = vmatprep.mubr.f32.mxu0 %v213
        %603 = vmatmul.mubr.f32.gmra.mrb[0].mxu0 %v197
        %v604 = vpop.f32.mrb[0].mxu0
        %v605 = vadd.f32 %v486, %v604
        %v606 = vpop.f32.mrb[0].mxu0
        %607 = vmatprep.mubr.f32.mxu0 %v214
        %608 = vmatmul.mubr.f32.gmra.mrb[0].mxu0 %v198
        %v609 = vpop.f32.mrb[0].mxu0
        %v610 = vadd.f32 %v486, %v609
        %v611 = vpop.f32.mrb[0].mxu0
        %612 = vmatprep.mubr.f32.mxu0 %v215
        %613 = vmatmul.mubr.f32.gmra.mrb[0].mxu0 %v199
        %v614 = vpop.f32.mrb[0].mxu0
        %v615 = vadd.f32 %v486, %v614
        %v616 = vpop.f32.mrb[0].mxu0
        %617 = vmatprep.mubr.f32.mxu0 %v216
        %618 = vmatmul.mubr.f32.gmra.mrb[0].mxu0 %v200
        %v619 = vpop.f32.mrb[0].mxu0
        %v620 = vadd.f32 %v486, %v619
        %v621 = vpop.f32.mrb[0].mxu0
        %622 = vmatprep.mubr.f32.mxu0 %v217
        %623 = vmatmul.mubr.f32.gmra.mrb[0].mxu0 %v201
        %v624 = vpop.f32.mrb[0].mxu0
        %v625 = vadd.f32 %v486, %v624
        %v626 = vpop.f32.mrb[0].mxu0
        %627 = vmatprep.mubr.f32.mxu0 %v218
        %628 = vmatmul.mubr.f32.gmra.mrb[0].mxu0 %v202
        %v629 = vpop.f32.mrb[0].mxu0
        %v630 = vadd.f32 %v486, %v629
        %v631 = vpop.f32.mrb[0].mxu0
        %632 = vdwg.mxu0
        %633 = vmatprep.subr.mxu0 0.0
        %634 = vmatpush1.msra.mxu0 %v369
        %635 = vmatprep.subr.mxu0 0.0
        %636 = vmatpush1.msra.mxu0 %v370
        %637 = vmatprep.subr.mxu0 0.0
        %638 = vmatpush1.msra.mxu0 %v371
        %639 = vmatprep.subr.mxu0 0.0
        %640 = vmatpush1.msra.mxu0 %v372
        %641 = vmatprep.subr.mxu0 0.0
        %642 = vmatpush1.msra.mxu0 %v373
        %643 = vmatprep.subr.mxu0 0.0
        %644 = vmatpush1.msra.mxu0 %v374
        %645 = vmatprep.subr.mxu0 0.0
        %646 = vmatpush1.msra.mxu0 %v375
        %647 = vmatprep.subr.mxu0 0.0
        %648 = vmatpush1.msra.mxu0 %v376
        %649 = vmatprep.subr.mxu0 0.0
        %650 = vmatpush1.msra.mxu0 %v377
        %651 = vmatprep.subr.mxu0 0.0
        %652 = vmatpush1.msra.mxu0 %v378
        %653 = vmatprep.subr.mxu0 0.0
        %654 = vmatpush1.msra.mxu0 %v379
        %655 = vmatprep.subr.mxu0 0.0
        %656 = vmatpush1.msra.mxu0 %v380
        %657 = vmatprep.subr.mxu0 0.0
        %658 = vmatpush1.msra.mxu0 %v381
        %659 = vmatprep.subr.mxu0 0.0
        %660 = vmatpush1.msra.mxu0 %v382
        %661 = vmatprep.subr.mxu0 0.0
        %662 = vmatpush1.msra.mxu0 %v383
        %663 = vmatprep.subr.mxu0 0.0
        %664 = vmatpush1.msra.mxu0 %v384
        %665 = vmatprep.subr.mxu0 0.0
        %666 = vmatpush1.msra.mxu0 %v385
        %667 = vmatprep.subr.mxu0 0.0
        %668 = vmatpush1.msra.mxu0 %v386
        %669 = vmatprep.subr.mxu0 0.0
        %670 = vmatpush1.msra.mxu0 %v387
        %671 = vmatprep.subr.mxu0 0.0
        %672 = vmatpush1.msra.mxu0 %v388
        %673 = vmatprep.subr.mxu0 0.0
        %674 = vmatpush1.msra.mxu0 %v389
        %675 = vmatprep.subr.mxu0 0.0
        %676 = vmatpush1.msra.mxu0 %v390
        %677 = vmatprep.subr.mxu0 0.0
        %678 = vmatpush1.msra.mxu0 %v391
        %679 = vmatprep.subr.mxu0 0.0
        %680 = vmatpush1.msra.mxu0 %v392
        %681 = vmatprep.subr.mxu0 0.0
        %682 = vmatpush1.msra.mxu0 %v393
        %683 = vmatprep.subr.mxu0 0.0
        %684 = vmatpush1.msra.mxu0 %v394
        %685 = vmatprep.subr.mxu0 0.0
        %686 = vmatpush1.msra.mxu0 %v395
        %687 = vmatprep.subr.mxu0 0.0
        %688 = vmatpush1.msra.mxu0 %v396
        %689 = vmatprep.subr.mxu0 0.0
        %690 = vmatpush1.msra.mxu0 %v397
        %691 = vmatprep.subr.mxu0 0.0
        %692 = vmatpush1.msra.mxu0 %v398
        %693 = vmatprep.subr.mxu0 0.0
        %694 = vmatpush1.msra.mxu0 %v399
        %695 = vmatprep.subr.mxu0 0.0
        %696 = vmatpush1.msra.mxu0 %v400
        %697 = vmatprep.mubr.f32.mxu0 %v238
        %698 = vmatmul.mubr.f32.gmra.mrb[0].mxu0 %v219
        %v699 = vpop.f32.mrb[0].mxu0
        %v700 = vadd.f32 %v555, %v699
        %v701 = vpop.f32.mrb[0].mxu0
        %702 = vmatprep.mubr.f32.mxu0 %v239
        %703 = vmatmul.mubr.f32.gmra.mrb[0].mxu0 %v220
        %v704 = vpop.f32.mrb[0].mxu0
        %v705 = vadd.f32 %v560, %v704
        %v706 = vpop.f32.mrb[0].mxu0
        %707 = vmatprep.mubr.f32.mxu0 %v240
        %708 = vmatmul.mubr.f32.gmra.mrb[0].mxu0 %v221
        %v709 = vpop.f32.mrb[0].mxu0
        %v710 = vadd.f32 %v565, %v709
        %v711 = vpop.f32.mrb[0].mxu0
        %712 = vmatprep.mubr.f32.mxu0 %v241
        %713 = vmatmul.mubr.f32.gmra.mrb[0].mxu0 %v222
        %v714 = vpop.f32.mrb[0].mxu0
        %v715 = vadd.f32 %v570, %v714
        %v716 = vpop.f32.mrb[0].mxu0
        %717 = vmatprep.mubr.f32.mxu0 %v242
        %718 = vmatmul.mubr.f32.gmra.mrb[0].mxu0 %v223
        %v719 = vpop.f32.mrb[0].mxu0
        %v720 = vadd.f32 %v575, %v719
        %v721 = vpop.f32.mrb[0].mxu0
        %722 = vmatprep.mubr.f32.mxu0 %v243
        %723 = vmatmul.mubr.f32.gmra.mrb[0].mxu0 %v224
        %v724 = vpop.f32.mrb[0].mxu0
        %v725 = vadd.f32 %v580, %v724
        %v726 = vpop.f32.mrb[0].mxu0
        %727 = vmatprep.mubr.f32.mxu0 %v244
        %728 = vmatmul.mubr.f32.gmra.mrb[0].mxu0 %v225
        %v729 = vpop.f32.mrb[0].mxu0
        %v730 = vadd.f32 %v585, %v729
        %v731 = vpop.f32.mrb[0].mxu0
        %732 = vmatprep.mubr.f32.mxu0 %v245
        %733 = vmatmul.mubr.f32.gmra.mrb[0].mxu0 %v226
        %v734 = vpop.f32.mrb[0].mxu0
        %v735 = vadd.f32 %v590, %v734
        %v736 = vpop.f32.mrb[0].mxu0
        %737 = vmatprep.mubr.f32.mxu0 %v246
        %738 = vmatmul.mubr.f32.gmra.mrb[0].mxu0 %v227
        %v739 = vpop.f32.mrb[0].mxu0
        %v740 = vadd.f32 %v595, %v739
        %v741 = vpop.f32.mrb[0].mxu0
        %742 = vmatprep.mubr.f32.mxu0 %v247
        %743 = vmatmul.mubr.f32.gmra.mrb[0].mxu0 %v228
        %v744 = vpop.f32.mrb[0].mxu0
        %v745 = vadd.f32 %v600, %v744
        %v746 = vpop.f32.mrb[0].mxu0
        %747 = vmatprep.mubr.f32.mxu0 %v248
        %748 = vmatmul.mubr.f32.gmra.mrb[0].mxu0 %v229
        %v749 = vpop.f32.mrb[0].mxu0
        %v750 = vadd.f32 %v605, %v749
        %v751 = vpop.f32.mrb[0].mxu0
        %752 = vmatprep.mubr.f32.mxu0 %v249
        %753 = vmatmul.mubr.f32.gmra.mrb[0].mxu0 %v230
        %v754 = vpop.f32.mrb[0].mxu0
        %v755 = vadd.f32 %v610, %v754
        %v756 = vpop.f32.mrb[0].mxu0
        %757 = vmatprep.mubr.f32.mxu0 %v250
        %758 = vmatmul.mubr.f32.gmra.mrb[0].mxu0 %v231
        %v759 = vpop.f32.mrb[0].mxu0
        %v760 = vadd.f32 %v615, %v759
        %v761 = vpop.f32.mrb[0].mxu0
        %762 = vmatprep.mubr.f32.mxu0 %v251
        %763 = vmatmul.mubr.f32.gmra.mrb[0].mxu0 %v232
        %v764 = vpop.f32.mrb[0].mxu0
        %v765 = vadd.f32 %v620, %v764
        %v766 = vpop.f32.mrb[0].mxu0
        %767 = vmatprep.mubr.f32.mxu0 %v252
        %768 = vmatmul.mubr.f32.gmra.mrb[0].mxu0 %v233
        %v769 = vpop.f32.mrb[0].mxu0
        %v770 = vadd.f32 %v625, %v769
        %v771 = vpop.f32.mrb[0].mxu0
        %772 = vmatprep.mubr.f32.mxu0 %v253
        %773 = vmatmul.mubr.f32.gmra.mrb[0].mxu0 %v234
        %v774 = vpop.f32.mrb[0].mxu0
        %v775 = vadd.f32 %v630, %v774
        %v776 = vpop.f32.mrb[0].mxu0
        %777 = vdwg.mxu0
        %778 = vmatprep.subr.mxu0 0.0
        %779 = vmatpush1.msra.mxu0 %v401
        %780 = vmatprep.subr.mxu0 0.0
        %781 = vmatpush1.msra.mxu0 %v402
        %782 = vmatprep.subr.mxu0 0.0
        %783 = vmatpush1.msra.mxu0 %v403
        %784 = vmatprep.subr.mxu0 0.0
        %785 = vmatpush1.msra.mxu0 %v404
        %786 = vmatprep.subr.mxu0 0.0
        %787 = vmatpush1.msra.mxu0 %v405
        %788 = vmatprep.subr.mxu0 0.0
        %789 = vmatpush1.msra.mxu0 %v406
        %790 = vmatprep.subr.mxu0 0.0
        %791 = vmatpush1.msra.mxu0 %v407
        %792 = vmatprep.subr.mxu0 0.0
        %793 = vmatpush1.msra.mxu0 %v408
        %794 = vmatprep.subr.mxu0 0.0
        %795 = vmatpush1.msra.mxu0 %v409
        %796 = vmatprep.subr.mxu0 0.0
        %797 = vmatpush1.msra.mxu0 %v410
        %798 = vmatprep.subr.mxu0 0.0
        %799 = vmatpush1.msra.mxu0 %v411
        %800 = vmatprep.subr.mxu0 0.0
        %801 = vmatpush1.msra.mxu0 %v412
        %802 = vmatprep.subr.mxu0 0.0
        %803 = vmatpush1.msra.mxu0 %v413
        %804 = vmatprep.subr.mxu0 0.0
        %805 = vmatpush1.msra.mxu0 %v414
        %806 = vmatprep.subr.mxu0 0.0
        %807 = vmatpush1.msra.mxu0 %v415
        %808 = vmatprep.subr.mxu0 0.0
        %809 = vmatpush1.msra.mxu0 %v416
        %810 = vmatprep.subr.mxu0 0.0
        %811 = vmatpush1.msra.mxu0 %v417
        %812 = vmatprep.subr.mxu0 0.0
        %813 = vmatpush1.msra.mxu0 %v418
        %814 = vmatprep.subr.mxu0 0.0
        %815 = vmatpush1.msra.mxu0 %v419
        %816 = vmatprep.subr.mxu0 0.0
        %817 = vmatpush1.msra.mxu0 %v420
        %818 = vmatprep.subr.mxu0 0.0
        %819 = vmatpush1.msra.mxu0 %v421
        %820 = vmatprep.subr.mxu0 0.0
        %821 = vmatpush1.msra.mxu0 %v422
        %822 = vmatprep.subr.mxu0 0.0
        %823 = vmatpush1.msra.mxu0 %v423
        %824 = vmatprep.subr.mxu0 0.0
        %825 = vmatpush1.msra.mxu0 %v424
        %826 = vmatprep.subr.mxu0 0.0
        %827 = vmatpush1.msra.mxu0 %v425
        %828 = vmatprep.subr.mxu0 0.0
        %829 = vmatpush1.msra.mxu0 %v426
        %830 = vmatprep.subr.mxu0 0.0
        %831 = vmatpush1.msra.mxu0 %v427
        %832 = vmatprep.subr.mxu0 0.0
        %833 = vmatpush1.msra.mxu0 %v428
        %834 = vmatprep.subr.mxu0 0.0
        %835 = vmatpush1.msra.mxu0 %v429
        %836 = vmatprep.subr.mxu0 0.0
        %837 = vmatpush1.msra.mxu0 %v430
        %838 = vmatprep.subr.mxu0 0.0
        %839 = vmatpush1.msra.mxu0 %v431
        %840 = vmatprep.subr.mxu0 0.0
        %841 = vmatpush1.msra.mxu0 %v432
        %842 = vmatprep.mubr.f32.mxu0 %v270
        %843 = vmatmul.mubr.f32.gmra.mrb[0].mxu0 %v254
        %v844 = vpop.f32.mrb[0].mxu0
        %v845 = vadd.f32 %v700, %v844
        %v846 = vpop.f32.mrb[0].mxu0
        %847 = vmatprep.mubr.f32.mxu0 %v271
        %848 = vmatmul.mubr.f32.gmra.mrb[0].mxu0 %v255
        %v849 = vpop.f32.mrb[0].mxu0
        %v850 = vadd.f32 %v705, %v849
        %v851 = vpop.f32.mrb[0].mxu0
        %852 = vmatprep.mubr.f32.mxu0 %v272
        %853 = vmatmul.mubr.f32.gmra.mrb[0].mxu0 %v256
        %v854 = vpop.f32.mrb[0].mxu0
        %v855 = vadd.f32 %v710, %v854
        %v856 = vpop.f32.mrb[0].mxu0
        %857 = vmatprep.mubr.f32.mxu0 %v273
        %858 = vmatmul.mubr.f32.gmra.mrb[0].mxu0 %v257
        %v859 = vpop.f32.mrb[0].mxu0
        %v860 = vadd.f32 %v715, %v859
        %v861 = vpop.f32.mrb[0].mxu0
        %862 = vmatprep.mubr.f32.mxu0 %v274
        %863 = vmatmul.mubr.f32.gmra.mrb[0].mxu0 %v258
        %v864 = vpop.f32.mrb[0].mxu0
        %v865 = vadd.f32 %v720, %v864
        %v866 = vpop.f32.mrb[0].mxu0
        %867 = vmatprep.mubr.f32.mxu0 %v275
        %868 = vmatmul.mubr.f32.gmra.mrb[0].mxu0 %v259
        %v869 = vpop.f32.mrb[0].mxu0
        %v870 = vadd.f32 %v725, %v869
        %v871 = vpop.f32.mrb[0].mxu0
        %872 = vmatprep.mubr.f32.mxu0 %v276
        %873 = vmatmul.mubr.f32.gmra.mrb[0].mxu0 %v260
        %v874 = vpop.f32.mrb[0].mxu0
        %v875 = vadd.f32 %v730, %v874
        %v876 = vpop.f32.mrb[0].mxu0
        %877 = vmatprep.mubr.f32.mxu0 %v277
        %878 = vmatmul.mubr.f32.gmra.mrb[0].mxu0 %v261
        %v879 = vpop.f32.mrb[0].mxu0
        %v880 = vadd.f32 %v735, %v879
        %v881 = vpop.f32.mrb[0].mxu0
        %882 = vmatprep.mubr.f32.mxu0 %v278
        %883 = vmatmul.mubr.f32.gmra.mrb[0].mxu0 %v262
        %v884 = vpop.f32.mrb[0].mxu0
        %v885 = vadd.f32 %v740, %v884
        %v886 = vpop.f32.mrb[0].mxu0
        %887 = vmatprep.mubr.f32.mxu0 %v279
        %888 = vmatmul.mubr.f32.gmra.mrb[0].mxu0 %v263
        %v889 = vpop.f32.mrb[0].mxu0
        %v890 = vadd.f32 %v745, %v889
        %v891 = vpop.f32.mrb[0].mxu0
        %892 = vmatprep.mubr.f32.mxu0 %v280
        %893 = vmatmul.mubr.f32.gmra.mrb[0].mxu0 %v264
        %v894 = vpop.f32.mrb[0].mxu0
        %v895 = vadd.f32 %v750, %v894
        %v896 = vpop.f32.mrb[0].mxu0
        %897 = vmatprep.mubr.f32.mxu0 %v281
        %898 = vmatmul.mubr.f32.gmra.mrb[0].mxu0 %v265
        %v899 = vpop.f32.mrb[0].mxu0
        %v900 = vadd.f32 %v755, %v899
        %v901 = vpop.f32.mrb[0].mxu0
        %902 = vmatprep.mubr.f32.mxu0 %v282
        %903 = vmatmul.mubr.f32.gmra.mrb[0].mxu0 %v266
        %v904 = vpop.f32.mrb[0].mxu0
        %v905 = vadd.f32 %v760, %v904
        %v906 = vpop.f32.mrb[0].mxu0
        %907 = vmatprep.mubr.f32.mxu0 %v283
        %908 = vmatmul.mubr.f32.gmra.mrb[0].mxu0 %v267
        %v909 = vpop.f32.mrb[0].mxu0
        %v910 = vadd.f32 %v765, %v909
        %v911 = vpop.f32.mrb[0].mxu0
        %912 = vmatprep.mubr.f32.mxu0 %v284
        %913 = vmatmul.mubr.f32.gmra.mrb[0].mxu0 %v268
        %v914 = vpop.f32.mrb[0].mxu0
        %v915 = vadd.f32 %v770, %v914
        %v916 = vpop.f32.mrb[0].mxu0
        %917 = vmatprep.mubr.f32.mxu0 %v285
        %918 = vmatmul.mubr.f32.gmra.mrb[0].mxu0 %v269
        %v919 = vpop.f32.mrb[0].mxu0
        %v920 = vadd.f32 %v775, %v919
        %v921 = vpop.f32.mrb[0].mxu0
        %922 = vdwg.mxu0
        %923 = vmatprep.subr.mxu0 0.0
        %924 = vmatpush1.msra.mxu0 %v433
        %925 = vmatprep.subr.mxu0 0.0
        %926 = vmatpush1.msra.mxu0 %v434
        %927 = vmatprep.subr.mxu0 0.0
        %928 = vmatpush1.msra.mxu0 %v435
        %929 = vmatprep.subr.mxu0 0.0
        %930 = vmatpush1.msra.mxu0 %v436
        %931 = vmatprep.subr.mxu0 0.0
        %932 = vmatpush1.msra.mxu0 %v437
        %933 = vmatprep.subr.mxu0 0.0
        %934 = vmatpush1.msra.mxu0 %v438
        %935 = vmatprep.subr.mxu0 0.0
        %936 = vmatpush1.msra.mxu0 %v439
        %937 = vmatprep.subr.mxu0 0.0
        %938 = vmatpush1.msra.mxu0 %v440
        %939 = vmatprep.subr.mxu0 0.0
        %940 = vmatpush1.msra.mxu0 %v441
        %941 = vmatprep.subr.mxu0 0.0
        %942 = vmatpush1.msra.mxu0 %v442
        %943 = vmatprep.subr.mxu0 0.0
        %944 = vmatpush1.msra.mxu0 %v443
        %945 = vmatprep.subr.mxu0 0.0
        %946 = vmatpush1.msra.mxu0 %v444
        %947 = vmatprep.subr.mxu0 0.0
        %948 = vmatpush1.msra.mxu0 %v445
        %949 = vmatprep.subr.mxu0 0.0
        %950 = vmatpush1.msra.mxu0 %v446
        %951 = vmatprep.subr.mxu0 0.0
        %952 = vmatpush1.msra.mxu0 %v447
        %953 = vmatprep.subr.mxu0 0.0
        %954 = vmatpush1.msra.mxu0 %v448
        %955 = vmatprep.subr.mxu0 0.0
        %956 = vmatpush1.msra.mxu0 %v449
        %957 = vmatprep.subr.mxu0 0.0
        %958 = vmatpush1.msra.mxu0 %v450
        %959 = vmatprep.subr.mxu0 0.0
        %960 = vmatpush1.msra.mxu0 %v451
        %961 = vmatprep.subr.mxu0 0.0
        %962 = vmatpush1.msra.mxu0 %v452
        %963 = vmatprep.subr.mxu0 0.0
        %964 = vmatpush1.msra.mxu0 %v453
        %965 = vmatprep.subr.mxu0 0.0
        %966 = vmatpush1.msra.mxu0 %v454
        %967 = vmatprep.subr.mxu0 0.0
        %968 = vmatpush1.msra.mxu0 %v455
        %969 = vmatprep.subr.mxu0 0.0
        %970 = vmatpush1.msra.mxu0 %v456
        %971 = vmatprep.subr.mxu0 0.0
        %972 = vmatpush1.msra.mxu0 %v457
        %973 = vmatprep.subr.mxu0 0.0
        %974 = vmatpush1.msra.mxu0 %v458
        %975 = vmatprep.subr.mxu0 0.0
        %976 = vmatpush1.msra.mxu0 %v459
        %977 = vmatprep.subr.mxu0 0.0
        %978 = vmatpush1.msra.mxu0 %v460
        %979 = vmatprep.subr.mxu0 0.0
        %980 = vmatpush1.msra.mxu0 %v461
        %981 = vmatprep.subr.mxu0 0.0
        %982 = vmatpush1.msra.mxu0 %v462
        %983 = vmatprep.subr.mxu0 0.0
        %984 = vmatpush1.msra.mxu0 %v463
        %985 = vmatprep.subr.mxu0 0.0
        %986 = vmatpush1.msra.mxu0 %v464
        %987 = vmatprep.mubr.f32.mxu0 %v305
        %988 = vmatmul.mubr.f32.gmra.mrb[0].mxu0 %v289
        %v989 = vpop.f32.mrb[0].mxu0
        %v990 = vadd.f32 %v845, %v989
        %v991 = vpop.f32.mrb[0].mxu0
        %992 = vmatprep.mubr.f32.mxu0 %v306
        %993 = vmatmul.mubr.f32.gmra.mrb[0].mxu0 %v290
        %v994 = vpop.f32.mrb[0].mxu0
        %v995 = vadd.f32 %v850, %v994
        %v996 = vpop.f32.mrb[0].mxu0
        %997 = vmatprep.mubr.f32.mxu0 %v307
        %998 = vmatmul.mubr.f32.gmra.mrb[0].mxu0 %v291
        %v999 = vpop.f32.mrb[0].mxu0
        %v1000 = vadd.f32 %v855, %v999
        %v1001 = vpop.f32.mrb[0].mxu0
        %1002 = vmatprep.mubr.f32.mxu0 %v308
        %1003 = vmatmul.mubr.f32.gmra.mrb[0].mxu0 %v292
        %v1004 = vpop.f32.mrb[0].mxu0
        %v1005 = vadd.f32 %v860, %v1004
        %v1006 = vpop.f32.mrb[0].mxu0
        %1007 = vmatprep.mubr.f32.mxu0 %v309
        %1008 = vmatmul.mubr.f32.gmra.mrb[0].mxu0 %v293
        %v1009 = vpop.f32.mrb[0].mxu0
        %v1010 = vadd.f32 %v865, %v1009
        %v1011 = vpop.f32.mrb[0].mxu0
        %1012 = vmatprep.mubr.f32.mxu0 %v310
        %1013 = vmatmul.mubr.f32.gmra.mrb[0].mxu0 %v294
        %v1014 = vpop.f32.mrb[0].mxu0
        %v1015 = vadd.f32 %v870, %v1014
        %v1016 = vpop.f32.mrb[0].mxu0
        %1017 = vmatprep.mubr.f32.mxu0 %v311
        %1018 = vmatmul.mubr.f32.gmra.mrb[0].mxu0 %v295
        %v1019 = vpop.f32.mrb[0].mxu0
        %v1020 = vadd.f32 %v875, %v1019
        %v1021 = vpop.f32.mrb[0].mxu0
        %1022 = vmatprep.mubr.f32.mxu0 %v312
        %1023 = vmatmul.mubr.f32.gmra.mrb[0].mxu0 %v296
        %v1024 = vpop.f32.mrb[0].mxu0
        %v1025 = vadd.f32 %v880, %v1024
        %v1026 = vpop.f32.mrb[0].mxu0
        %1027 = vmatprep.mubr.f32.mxu0 %v313
        %1028 = vmatmul.mubr.f32.gmra.mrb[0].mxu0 %v297
        %v1029 = vpop.f32.mrb[0].mxu0
        %v1030 = vadd.f32 %v885, %v1029
        %v1031 = vpop.f32.mrb[0].mxu0
        %1032 = vmatprep.mubr.f32.mxu0 %v314
        %1033 = vmatmul.mubr.f32.gmra.mrb[0].mxu0 %v298
        %v1034 = vpop.f32.mrb[0].mxu0
        %v1035 = vadd.f32 %v890, %v1034
        %v1036 = vpop.f32.mrb[0].mxu0
        %1037 = vmatprep.mubr.f32.mxu0 %v315
        %1038 = vmatmul.mubr.f32.gmra.mrb[0].mxu0 %v299
        %v1039 = vpop.f32.mrb[0].mxu0
        %v1040 = vadd.f32 %v895, %v1039
        %v1041 = vpop.f32.mrb[0].mxu0
        %1042 = vmatprep.mubr.f32.mxu0 %v316
        %1043 = vmatmul.mubr.f32.gmra.mrb[0].mxu0 %v300
        %v1044 = vpop.f32.mrb[0].mxu0
        %v1045 = vadd.f32 %v900, %v1044
        %v1046 = vpop.f32.mrb[0].mxu0
        %1047 = vmatprep.mubr.f32.mxu0 %v317
        %1048 = vmatmul.mubr.f32.gmra.mrb[0].mxu0 %v301
        %v1049 = vpop.f32.mrb[0].mxu0
        %v1050 = vadd.f32 %v905, %v1049
        %v1051 = vpop.f32.mrb[0].mxu0
        %1052 = vmatprep.mubr.f32.mxu0 %v318
        %1053 = vmatmul.mubr.f32.gmra.mrb[0].mxu0 %v302
        %v1054 = vpop.f32.mrb[0].mxu0
        %v1055 = vadd.f32 %v910, %v1054
        %v1056 = vpop.f32.mrb[0].mxu0
        %1057 = vmatprep.mubr.f32.mxu0 %v319
        %1058 = vmatmul.mubr.f32.gmra.mrb[0].mxu0 %v303
        %v1059 = vpop.f32.mrb[0].mxu0
        %v1060 = vadd.f32 %v915, %v1059
        %v1061 = vpop.f32.mrb[0].mxu0
        %1062 = vmatprep.mubr.f32.mxu0 %v320
        %1063 = vmatmul.mubr.f32.gmra.mrb[0].mxu0 %v304
        %v1064 = vpop.f32.mrb[0].mxu0
        %v1065 = vadd.f32 %v920, %v1064
        %v1066 = vpop.f32.mrb[0].mxu0
        %1067 = vdwg.mxu0
        %1068 = vmatprep.subr.mxu0 0.0
        %1069 = vmatpush1.msra.mxu0 %v465
        %1070 = vmatprep.subr.mxu0 0.0
        %1071 = vmatpush1.msra.mxu0 %v466
        %1072 = vmatprep.subr.mxu0 0.0
        %1073 = vmatpush1.msra.mxu0 %v467
        %1074 = vmatprep.subr.mxu0 0.0
        %1075 = vmatpush1.msra.mxu0 %v468
        %1076 = vmatprep.subr.mxu0 0.0
        %1077 = vmatpush1.msra.mxu0 %v469
        %1078 = vmatprep.subr.mxu0 0.0
        %1079 = vmatpush1.msra.mxu0 %v470
        %1080 = vmatprep.subr.mxu0 0.0
        %1081 = vmatpush1.msra.mxu0 %v471
        %1082 = vmatprep.subr.mxu0 0.0
        %1083 = vmatpush1.msra.mxu0 %v472
        %1084 = vmatprep.subr.mxu0 0.0
        %1085 = vmatpush1.msra.mxu0 %v473
        %1086 = vmatprep.subr.mxu0 0.0
        %1087 = vmatpush1.msra.mxu0 %v474
        %1088 = vmatprep.subr.mxu0 0.0
        %1089 = vmatpush1.msra.mxu0 %v475
        %1090 = vmatprep.subr.mxu0 0.0
        %1091 = vmatpush1.msra.mxu0 %v476
        %1092 = vmatprep.subr.mxu0 0.0
        %1093 = vmatpush1.msra.mxu0 %v477
        %1094 = vmatprep.subr.mxu0 0.0
        %1095 = vmatpush1.msra.mxu0 %v478
        %1096 = vmatprep.subr.mxu0 0.0
        %1097 = vmatpush1.msra.mxu0 %v479
        %1098 = vmatprep.subr.mxu0 0.0
        %1099 = vmatpush1.msra.mxu0 %v480
        %1100 = vmatprep.subr.mxu0 0.0
        %1101 = vmatpush1.msra.mxu0 0.0
        %1102 = vmatprep.subr.mxu0 0.0
        %1103 = vmatpush1.msra.mxu0 0.0
        %1104 = vmatprep.subr.mxu0 0.0
        %1105 = vmatpush1.msra.mxu0 0.0
        %1106 = vmatprep.subr.mxu0 0.0
        %1107 = vmatpush1.msra.mxu0 0.0
        %1108 = vmatprep.subr.mxu0 0.0
        %1109 = vmatpush1.msra.mxu0 0.0
        %1110 = vmatprep.subr.mxu0 0.0
        %1111 = vmatpush1.msra.mxu0 0.0
        %1112 = vmatprep.subr.mxu0 0.0
        %1113 = vmatpush1.msra.mxu0 0.0
        %1114 = vmatprep.subr.mxu0 0.0
        %1115 = vmatpush1.msra.mxu0 0.0
        %1116 = vmatprep.subr.mxu0 0.0
        %1117 = vmatpush1.msra.mxu0 0.0
        %1118 = vmatprep.subr.mxu0 0.0
        %1119 = vmatpush1.msra.mxu0 0.0
        %1120 = vmatprep.subr.mxu0 0.0
        %1121 = vmatpush1.msra.mxu0 0.0
        %1122 = vmatprep.subr.mxu0 0.0
        %1123 = vmatpush1.msra.mxu0 0.0
        %1124 = vmatprep.subr.mxu0 0.0
        %1125 = vmatpush1.msra.mxu0 0.0
        %1126 = vmatprep.subr.mxu0 0.0
        %1127 = vmatpush1.msra.mxu0 0.0
        %1128 = vmatprep.subr.mxu0 0.0
        %1129 = vmatpush1.msra.mxu0 0.0
        %1130 = vmatprep.subr.mxu0 0.0
        %1131 = vmatpush1.msra.mxu0 0.0
        %1132 = vmatprep.mubr.f32.mxu0 0.0
        %1133 = vmatmul.mubr.f32.gmra.mrb[0].mxu0 %v321
        %v1134 = vpop.f32.mrb[0].mxu0
        %v1135 = vadd.f32 %v990, %v1134
        %v1136 = vpop.f32.mrb[0].mxu0
        %1137 = vmatprep.mubr.f32.mxu0 0.0
        %1138 = vmatmul.mubr.f32.gmra.mrb[0].mxu0 %v322
        %v1139 = vpop.f32.mrb[0].mxu0
        %v1140 = vadd.f32 %v995, %v1139
        %v1141 = vpop.f32.mrb[0].mxu0
        %1142 = vmatprep.mubr.f32.mxu0 0.0
        %1143 = vmatmul.mubr.f32.gmra.mrb[0].mxu0 %v323
        %v1144 = vpop.f32.mrb[0].mxu0
        %v1145 = vadd.f32 %v1000, %v1144
        %v1146 = vpop.f32.mrb[0].mxu0
        %1147 = vmatprep.mubr.f32.mxu0 0.0
        %1148 = vmatmul.mubr.f32.gmra.mrb[0].mxu0 %v324
        %v1149 = vpop.f32.mrb[0].mxu0
        %v1150 = vadd.f32 %v1005, %v1149
        %v1151 = vpop.f32.mrb[0].mxu0
        %1152 = vmatprep.mubr.f32.mxu0 0.0
        %1153 = vmatmul.mubr.f32.gmra.mrb[0].mxu0 %v325
        %v1154 = vpop.f32.mrb[0].mxu0
        %v1155 = vadd.f32 %v1010, %v1154
        %v1156 = vpop.f32.mrb[0].mxu0
        %1157 = vmatprep.mubr.f32.mxu0 0.0
        %1158 = vmatmul.mubr.f32.gmra.mrb[0].mxu0 %v326
        %v1159 = vpop.f32.mrb[0].mxu0
        %v1160 = vadd.f32 %v1015, %v1159
        %v1161 = vpop.f32.mrb[0].mxu0
        %1162 = vmatprep.mubr.f32.mxu0 0.0
        %1163 = vmatmul.mubr.f32.gmra.mrb[0].mxu0 %v327
        %v1164 = vpop.f32.mrb[0].mxu0
        %v1165 = vadd.f32 %v1020, %v1164
        %v1166 = vpop.f32.mrb[0].mxu0
        %1167 = vmatprep.mubr.f32.mxu0 0.0
        %1168 = vmatmul.mubr.f32.gmra.mrb[0].mxu0 %v328
        %v1169 = vpop.f32.mrb[0].mxu0
        %v1170 = vadd.f32 %v1025, %v1169
        %v1171 = vpop.f32.mrb[0].mxu0
        %1172 = vmatprep.mubr.f32.mxu0 0.0
        %1173 = vmatmul.mubr.f32.gmra.mrb[0].mxu0 %v329
        %v1174 = vpop.f32.mrb[0].mxu0
        %v1175 = vadd.f32 %v1030, %v1174
        %v1176 = vpop.f32.mrb[0].mxu0
        %1177 = vmatprep.mubr.f32.mxu0 0.0
        %1178 = vmatmul.mubr.f32.gmra.mrb[0].mxu0 %v330
        %v1179 = vpop.f32.mrb[0].mxu0
        %v1180 = vadd.f32 %v1035, %v1179
        %v1181 = vpop.f32.mrb[0].mxu0
        %1182 = vmatprep.mubr.f32.mxu0 0.0
        %1183 = vmatmul.mubr.f32.gmra.mrb[0].mxu0 %v331
        %v1184 = vpop.f32.mrb[0].mxu0
        %v1185 = vadd.f32 %v1040, %v1184
        %v1186 = vpop.f32.mrb[0].mxu0
        %1187 = vmatprep.mubr.f32.mxu0 0.0
        %1188 = vmatmul.mubr.f32.gmra.mrb[0].mxu0 %v332
        %v1189 = vpop.f32.mrb[0].mxu0
        %v1190 = vadd.f32 %v1045, %v1189
        %v1191 = vpop.f32.mrb[0].mxu0
        %1192 = vmatprep.mubr.f32.mxu0 0.0
        %1193 = vmatmul.mubr.f32.gmra.mrb[0].mxu0 %v333
        %v1194 = vpop.f32.mrb[0].mxu0
        %v1195 = vadd.f32 %v1050, %v1194
        %v1196 = vpop.f32.mrb[0].mxu0
        %1197 = vmatprep.mubr.f32.mxu0 0.0
        %1198 = vmatmul.mubr.f32.gmra.mrb[0].mxu0 %v334
        %v1199 = vpop.f32.mrb[0].mxu0
        %v1200 = vadd.f32 %v1055, %v1199
        %v1201 = vpop.f32.mrb[0].mxu0
        %1202 = vmatprep.mubr.f32.mxu0 0.0
        %1203 = vmatmul.mubr.f32.gmra.mrb[0].mxu0 %v335
        %v1204 = vpop.f32.mrb[0].mxu0
        %v1205 = vadd.f32 %v1060, %v1204
        %v1206 = vpop.f32.mrb[0].mxu0
        %1207 = vmatprep.mubr.f32.mxu0 0.0
        %1208 = vmatmul.mubr.f32.gmra.mrb[0].mxu0 %v336
        %v1209 = vpop.f32.mrb[0].mxu0
        %v1210 = vadd.f32 %v1065, %v1209
        %v1211 = vpop.f32.mrb[0].mxu0
        %1212 = vdwg.mxu0
        %v1213 = vmax.f32 %v1135, 0.0
        %v1214 = vmax.f32 %v1140, 0.0
        %v1215 = vmax.f32 %v1145, 0.0
        %v1216 = vmax.f32 %v1150, 0.0
        %v1217 = vmax.f32 %v1155, 0.0
        %v1218 = vmax.f32 %v1160, 0.0
        %v1219 = vmax.f32 %v1165, 0.0
        %v1220 = vmax.f32 %v1170, 0.0
        %v1221 = vmax.f32 %v1175, 0.0
        %v1222 = vmax.f32 %v1180, 0.0
        %v1223 = vmax.f32 %v1185, 0.0
        %v1224 = vmax.f32 %v1190, 0.0
        %v1225 = vmax.f32 %v1195, 0.0
        %v1226 = vmax.f32 %v1200, 0.0
        %v1227 = vmax.f32 %v1205, 0.0
        %v1228 = vmax.f32 %v1210, 0.0
        %1229 = vst [vmem:[%s177] sm:$0xff] %v1213
        %1230 = vst [vmem:[%s177 + $0x8] sm:$0xff] %v1214
        %1231 = vst [vmem:[%s177 + $0x10] sm:$0xff] %v1215
        %1232 = vst [vmem:[%s177 + $0x18] sm:$0xff] %v1216
        %1233 = vst [vmem:[%s177 + $0x20] sm:$0xff] %v1217
        %1234 = vst [vmem:[%s177 + $0x28] sm:$0xff] %v1218
        %1235 = vst [vmem:[%s177 + $0x30] sm:$0xff] %v1219
        %1236 = vst [vmem:[%s177 + $0x38] sm:$0xff] %v1220
        %1237 = vst [vmem:[%s177 + $0x40] sm:$0xff] %v1221
        %1238 = vst [vmem:[%s177 + $0x48] sm:$0xff] %v1222
        %1239 = vst [vmem:[%s177 + $0x50] sm:$0xff] %v1223
        %1240 = vst [vmem:[%s177 + $0x58] sm:$0xff] %v1224
        %1241 = vst [vmem:[%s177 + $0x60] sm:$0xff] %v1225
        %1242 = vst [vmem:[%s177 + $0x68] sm:$0xff] %v1226
        %1243 = vst [vmem:[%s177 + $0x70] sm:$0xff] %v1227
        %1244 = vst [vmem:[%s177 + $0x78] sm:$0xff] %v1228
        %s1245 = sand.u32 %s107, 1
        %s1246 = scalar_lea.sflag [#allocation3], %s1245
        %s1247 = sand.u32 %s107, 1
        %s1248 = smul.addr %s1247, 128
        %s1249 = scalar_lea.vmem [#allocation2], %s1248
        // Predicated region
        $region33: #{tpu_custom_call.1} parent=31 // pred_check
          %p1250 = pneg %p117
        $region34: #{tpu_custom_call.1} parent=31 // pred_check_branch
          %1252 = sbr.rel (%p1250) target = $region36
        $region35: #{tpu_custom_call.1} parent=31 // pred_region
          %s1253 = smul.u32 8, %s22
          %s1255 = ssub.s32 2048, 2048
          %1256 = vsyncadd %s1246, %s1255
          %s1257 = smul.addr %s1253, 2
          %s1258 = smul.addr %s21, 32
          %s1259 = sadd.s32 %s1257, %s1258
          %s1260 = smul.addr %s1259, 128
          %s1261 = scalar_lea.hbm %s3, %s1260
          %s1262 = sshll.u32 %s1249, 4
          %s1263 = int_to_ptr.vmem [resolvable:$true] %s1262
          %1268 = dma.vmem_to_hbm [thread:$0]  %s1263, 2048, %s1261, %s1246, 128, 128, 8
        $region36: #{tpu_custom_call.1} parent=31 // pred_fallthru
          _
      $region32: #{tpu_custom_call.1} parent=5 // pred_fallthru
        _
      %p1269 = scmp.le.s32.totalorder 2, %s12
      // Predicated region
      $region37: #{tpu_custom_call.1} parent=5 // pred_check
        %p1270 = pneg %p1269
      $region38: #{tpu_custom_call.1} parent=5 // pred_check_branch
        %1272 = sbr.rel (%p1270) target = $region40
      $region39: #{tpu_custom_call.1} parent=5 // pred_region
        %s1273 = ssub.s32 %s12, 2
        // Predicated region
        $region41: #{tpu_custom_call.1} parent=39 // pred_check
          %p1274 = pneg %p123
        $region42: #{tpu_custom_call.1} parent=39 // pred_check_branch
          %1276 = sbr.rel (%p1274) target = $region44
        $region43: #{tpu_custom_call.1} parent=39 // pred_region
          %s1277 = sand.u32 %s108, 1
          %s1278 = scalar_lea.sflag [#allocation3], %s1277
          %s1279 = sand.u32 %s108, 1
          %s1280 = smul.addr %s1279, 128
          %s1281 = scalar_lea.vmem [#allocation2], %s1280
          %1282 = dma.done %s1278, 2048
        $region44: #{tpu_custom_call.1} parent=39 // pred_fallthru
          _
      $region40: #{tpu_custom_call.1} parent=5 // pred_fallthru
        _
    $region6: #{tpu_custom_call.1} parent=1 // loop_footer
      %s16 = sadd.s32 1, %s12
    $region7: #{tpu_custom_call.1} parent=1 // loop_footer_branch
      %11 = sbr.rel target = $region3
    $region8: #{tpu_custom_call.1} parent=1 // loop_exit
      _
    %1283 = vsyncpa [#allocation3], 1
    %s1284 = scalar_lea.sflag [#allocation3], 1
    %1285 = vsyncpa %s1284, 1

</llo_original>
